<compile_context>
chip_gen: v6e
topology: v6e:2x2x1
jax: 0.10.0
libtpu: 0.0.40
codegen_flags: <defaults>
</compile_context>

<pallas_src>
import functools

import jax
import jax.numpy as jnp
from jax import lax
from jax.experimental import pallas as pl
from jax.experimental.pallas import tpu as pltpu

LANES = 128
SUBLANES = 8


def _round_up(x, m):
    return (x + m - 1) // m * m


def _vmem_limit_bytes(default=64 * 1024 * 1024):
    """VMEM budget with headroom, derived from the chip when possible
    (v7x has 64 MiB/TC, v5e/v6e have 128 MiB)."""
    try:
        cap = getattr(pltpu.get_tpu_info(), "vmem_capacity_bytes", None)
    except Exception:
        cap = None
    if cap is None:
        return default
    return int(min(cap - cap // 8, 100 * 1024 * 1024))


def nb1d_kernel(x_ref, w_ref, v_ref, o_ref, *,
                dil, tile_h, halo, h_img, w_img, chunk_rows):
    """One (batch, H-tile) step of the non_bottleneck_1d block.

    x_ref : (1, Hp, Wp, Cp)  zero-padded NHWC image (storage dtype), VMEM-
                             resident for the whole batch element.
    w_ref : (4, Cp, 3*Cp)    bf16 fused tap weights; w_ref[c][:, k*Cp:(k+1)*Cp]
                             is the (C_in, C_out) matrix of tap k (spatial
                             offset (k-1)*dilation) of conv c, with
                             c: 0=conv3x1_1 1=conv1x3_1 2=conv3x1_2 3=conv1x3_2
    v_ref : (6, Cp)          f32 per-channel vectors:
                             0=b_3x1_1 1=bn1_scale 2=bn1_shift(+b_1x3_1 folded)
                             3=b_3x1_2 4=bn2_scale 5=bn2_shift(+b_1x3_2 folded)
    o_ref : (1, tile_h, Wp, Cp)
    """
    _, Hp, Wp, Cp = x_ref.shape
    R = tile_h + 2 * halo                      # window rows for this tile
    t = pl.program_id(1)
    row0 = pl.multiple_of(t * tile_h, tile_h)

    # Window in the storage dtype; bf16 casting happens per MXU chunk below.
    x_win = x_ref[0, pl.ds(row0, R), :, :]

    def cvec(row):                             # (1, 1, Cp) channel vector
        return v_ref[row:row + 1, :].reshape(1, 1, Cp)

    # W-boundary masks (built once, shared by both (1,3) convs).  Only the
    # +/-dilation taps need masking; masks are w.r.t. the *unpadded* width so
    # the W padding columns never contribute to valid columns.
    w_iota = lax.broadcasted_iota(jnp.int32, (1, Wp, 1), 1)
    masks = {off: jnp.logical_and(w_iota + off >= 0, w_iota + off < w_img)
             for off in sorted({-1, 1, -dil, dil})}

    def fused_taps(x_rows, conv_idx):
        """All 3 taps of one conv in a single MXU matmul (bf16 x bf16 -> f32)."""
        m = x_rows.shape[0]
        x2d = x_rows.astype(jnp.bfloat16).reshape(m * Wp, Cp)
        y = jnp.dot(x2d, w_ref[conv_idx], preferred_element_type=jnp.float32)
        return y.reshape(m, Wp, 3 * Cp)

    def conv_h(x, conv_idx, dd, bias):
        """(3,1) conv along H, taps at offsets (-dd, 0, +dd).  Only rows whose
        full receptive field lies inside `x` are produced (valid-range slices,
        no zero-concat shifts).  M-chunked so each chunk's 3*Cp-wide f32
        matmul result is reduced to Cp while still hot."""
        rows = x.shape[0]
        out_rows = rows - 2 * dd
        pieces = []
        r0 = 0
        while r0 < out_rows:
            cm = min(chunk_rows, out_rows - r0)
            y = fused_taps(x[r0:r0 + cm + 2 * dd], conv_idx)
            pieces.append(bias
                          + y[dd:dd + cm, :, Cp:2 * Cp]        # center tap
                          + y[0:cm, :, 0:Cp]                    # offset -dd
                          + y[2 * dd:2 * dd + cm, :, 2 * Cp:])  # offset +dd
            r0 += cm
        return pieces[0] if len(pieces) == 1 else jnp.concatenate(pieces, 0)

    def conv_w(x, conv_idx, dd):
        """(1,3) conv along W with 'same' zero padding via roll (XLU) + mask;
        bias-free (1x3 biases are folded into the BN shifts).  M-chunked."""
        rows = x.shape[0]
        pieces = []
        r0 = 0
        while r0 < rows:
            cm = min(chunk_rows, rows - r0)
            y = fused_taps(x[r0:r0 + cm], conv_idx)
            out = y[:, :, Cp:2 * Cp]                            # center tap
            for k, off in ((0, -dd), (2, dd)):
                yk = y[:, :, k * Cp:(k + 1) * Cp]
                rolled = pltpu.roll(yk, shift=(-off) % Wp, axis=1)
                out = out + jnp.where(masks[off], rolled, 0.0)
            pieces.append(out)
            r0 += cm
        return pieces[0] if len(pieces) == 1 else jnp.concatenate(pieces, 0)

    # conv3x1_1 (+bias) -> relu : window rows R -> R-2.
    a = jnp.maximum(conv_h(x_win, 0, 1, cvec(0)), 0.0)
    # conv1x3_1 -> bn1 (1x3 bias folded into shift) -> relu.
    a = conv_w(a, 1, 1)
    a = jnp.maximum(a * cvec(1) + cvec(2), 0.0)
    # Intermediate rows OUTSIDE the image must be zero: they are conv3x1_2's
    # 'same' zero padding (this is the correctness fix).
    h_iota = lax.broadcasted_iota(jnp.int32, (R - 2, 1, 1), 0)
    row_orig = (row0 - dil) + h_iota                 # original-image row index
    a = jnp.where(jnp.logical_and(row_orig >= 0, row_orig < h_img), a, 0.0)
    # conv3x1_2 (dilated, +bias) -> relu : rows R-2 -> tile_h.
    a = jnp.maximum(conv_h(a, 2, dil, cvec(3)), 0.0)
    # conv1x3_2 (dilated) -> bn2 (1x3 bias folded into shift).
    a = conv_w(a, 3, dil)
    a = a * cvec(4) + cvec(5)
    # Dropout2d is identity at inference; residual add + relu.
    res = x_win[halo:halo + tile_h].astype(jnp.float32)
    o_ref[0] = jnp.maximum(a + res, 0.0).astype(o_ref.dtype)


def non_bottleneck_1d_forward_nhwc(x_nhwc, wpack, vpack, *, dilated,
                                   tile_h=None, chunk_rows=16, out_dtype=None):
    """Native-NHWC entry point (preferred: avoids per-block layout passes).

    x_nhwc: (N, H, W, C); wpack: (4, 3, C, C) = (conv, tap, C_in, C_out) with
    conv order [conv3x1_1, conv1x3_1, conv3x1_2, conv1x3_2] and tap k at
    spatial offset (k-1)*dilation; vpack: (8, C) rows
    [b_3x1_1, b_1x3_1, bn1_scale, bn1_shift, b_3x1_2, b_1x3_2, bn2_scale,
     bn2_shift].  Returns (N, H, W, C).

    # TODO(synk): a full ERFNet port should keep activations in the padded
    # (Wp, Cp) NHWC layout (ideally bf16, via out_dtype) across consecutive
    # blocks so the per-block pad / trim HBM passes below disappear.
    """
    N, H, W, C = x_nhwc.shape
    Cp = _round_up(C, LANES)              # lane-dense channels
    Wp = _round_up(W, SUBLANES)           # 8-aligned sublane extent
    halo = 1 + dilated                    # H receptive field of the two H-convs
    if tile_h is None:
        tile_h = max(SUBLANES, min(32, _round_up(H, SUBLANES)))
    n_tiles = pl.cdiv(H, tile_h)
    h_core = n_tiles * tile_h
    Hp = h_core + 2 * halo
    out_dtype = x_nhwc.dtype if out_dtype is None else out_dtype

    # Zero padding: halo rows top/bottom (== the H-convs' 'same' zero padding),
    # H up to a multiple of tile_h, W to a multiple of 8, channels to 128.
    xp = jnp.pad(x_nhwc,
                 ((0, 0), (halo, Hp - H - halo), (0, Wp - W), (0, Cp - C)))

    # Fuse the 3 taps of each conv into one (Cp, 3*Cp) matrix, stored in bf16.
    wp = jnp.pad(wpack, ((0, 0), (0, 0), (0, Cp - C), (0, Cp - C)))
    w_cat = jnp.transpose(wp, (0, 2, 1, 3)).reshape(4, Cp, 3 * Cp)
    w_cat = w_cat.astype(jnp.bfloat16)

    # Fold the 1x3 conv biases into the BN shifts (pure parameter algebra).
    b1, b2, s1, t1, b3, b4, s2, t2 = [vpack[i].astype(jnp.float32)
                                      for i in range(8)]
    vk = jnp.stack([b1, s1, t1 + s1 * b2, b3, s2, t2 + s2 * b4], axis=0)
    vk = jnp.pad(vk, ((0, 0), (0, Cp - C)))

    kernel = functools.partial(nb1d_kernel, dil=dilated, tile_h=tile_h,
                               halo=halo, h_img=H, w_img=W,
                               chunk_rows=chunk_rows)
    out = pl.pallas_call(
        kernel,
        out_shape=jax.ShapeDtypeStruct((N, h_core, Wp, Cp), out_dtype),
        grid_spec=pltpu.PrefetchScalarGridSpec(
            num_scalar_prefetch=0,
            grid=(N, n_tiles),
            in_specs=[
                # Full padded image; block index constant along the tile axis
                # => DMA'd once per batch element, stays VMEM-resident.
                pl.BlockSpec((1, Hp, Wp, Cp), lambda n, t: (n, 0, 0, 0)),
                # Weights / channel vectors: constant index => fetched once.
                pl.BlockSpec((4, Cp, 3 * Cp), lambda n, t: (0, 0, 0)),
                pl.BlockSpec((6, Cp), lambda n, t: (0, 0)),
            ],
            out_specs=pl.BlockSpec((1, tile_h, Wp, Cp),
                                   lambda n, t: (n, t, 0, 0)),
        ),
        compiler_params=pltpu.CompilerParams(
            dimension_semantics=("parallel", "parallel"),
            vmem_limit_bytes=_vmem_limit_bytes()),
    )(xp, w_cat, vk)
    return out[:, :H, :W, :C]


def non_bottleneck_1d_forward(x_nchw, wpack, vpack, *, dilated,
                              tile_h=None, chunk_rows=16):
    """PyTorch-layout wrapper (NCHW in / NCHW out).  A full ERFNet port should
    stay NHWC and call non_bottleneck_1d_forward_nhwc to drop these passes."""
    x = jnp.transpose(x_nchw, (0, 2, 3, 1))
    y = non_bottleneck_1d_forward_nhwc(x, wpack, vpack, dilated=dilated,
                                       tile_h=tile_h, chunk_rows=chunk_rows)
    return jnp.transpose(y, (0, 3, 1, 2))


def reference_forward(x_nchw, wpack, vpack, *, dilated,
                      matmul_dtype=jnp.float32):
    """Pure-JAX reference (same inference semantics).  matmul_dtype=bfloat16
    mirrors the kernel's mixed-precision matmuls for a tight comparison."""
    x = jnp.transpose(x_nchw, (0, 2, 3, 1)).astype(jnp.float32)

    def conv(x, w, b, pad, rhs_dil):
        y = lax.conv_general_dilated(
            x.astype(matmul_dtype), w.astype(matmul_dtype),
            window_strides=(1, 1), padding=pad, rhs_dilation=rhs_dil,
            dimension_numbers=('NHWC', 'HWIO', 'NHWC'),
            preferred_element_type=jnp.float32)
        return y + b

    def conv_h(x, w, b, dil):                     # w: (3, C_in, C_out)
        return conv(x, w[:, None, :, :], b, ((dil, dil), (0, 0)), (dil, 1))

    def conv_w(x, w, b, dil):
        return conv(x, w[None, :, :, :], b, ((0, 0), (dil, dil)), (1, dil))

    b1, b2, s1, t1, b3, b4, s2, t2 = [vpack[i] for i in range(8)]
    o = jax.nn.relu(conv_h(x, wpack[0], b1, 1))
    o = conv_w(o, wpack[1], b2, 1)
    o = jax.nn.relu(o * s1 + t1)
    o = jax.nn.relu(conv_h(o, wpack[2], b3, dilated))
    o = conv_w(o, wpack[3], b4, dilated)
    o = o * s2 + t2
    o = jax.nn.relu(o + x)
    return jnp.transpose(o, (0, 3, 1, 2))


if __name__ == "__main__":
    # chann=64 as in ERFNet's encoder blocks; small ragged H exercises tiling
    # and both image-boundary paths (top / bottom halo masking).
    N, C, H, W = 2, 64, 20, 16
    dilated = 2
    eps = 1e-3                                    # BatchNorm2d eps=0.001

    key = jax.random.PRNGKey(0)
    keys = jax.random.split(key, 16)

    x = jax.random.normal(keys[0], (N, C, H, W), dtype=jnp.float32)

    # Synthetic parameters. wpack: (conv, tap, C_in, C_out) with
    # conv: 0=conv3x1_1 1=conv1x3_1 2=conv3x1_2 3=conv1x3_2,
    # tap k <-> spatial offset (k-1)*dilation.
    wpack = 0.1 * jax.random.normal(keys[1], (4, 3, C, C), dtype=jnp.float32)
    b1 = 0.1 * jax.random.normal(keys[2], (C,), dtype=jnp.float32)
    b2 = 0.1 * jax.random.normal(keys[3], (C,), dtype=jnp.float32)
    b3 = 0.1 * jax.random.normal(keys[4], (C,), dtype=jnp.float32)
    b4 = 0.1 * jax.random.normal(keys[5], (C,), dtype=jnp.float32)

    def bn_params(kg, kb, km, kv):
        gamma = 1.0 + 0.1 * jax.random.normal(kg, (C,), dtype=jnp.float32)
        beta = 0.1 * jax.random.normal(kb, (C,), dtype=jnp.float32)
        mean = 0.1 * jax.random.normal(km, (C,), dtype=jnp.float32)
        var = jax.random.uniform(kv, (C,), dtype=jnp.float32,
                                 minval=0.5, maxval=1.5)
        scale = gamma / jnp.sqrt(var + eps)
        shift = beta - mean * scale
        return scale, shift

    s1, t1 = bn_params(keys[6], keys[7], keys[8], keys[9])
    s2, t2 = bn_params(keys[10], keys[11], keys[12], keys[13])
    vpack = jnp.stack([b1, b2, s1, t1, b3, b4, s2, t2], axis=0)   # (8, C)

    out = non_bottleneck_1d_forward(x, wpack, vpack, dilated=dilated, tile_h=8)
    out = jax.block_until_ready(out)
    assert out.shape == (N, C, H, W), out.shape

    # Tight check against a reference that uses the same bf16 matmul inputs.
    ref_bf16 = reference_forward(x, wpack, vpack, dilated=dilated,
                                 matmul_dtype=jnp.bfloat16)
    err_bf16 = float(jnp.max(jnp.abs(out - ref_bf16)))
    assert err_bf16 < 2e-2, f"bf16-matched max abs err too large: {err_bf16}"

    # Looser sanity check against the full-f32 reference (bf16 rounding only).
    ref_f32 = reference_forward(x, wpack, vpack, dilated=dilated,
                                matmul_dtype=jnp.float32)
    err_f32 = float(jnp.max(jnp.abs(out - ref_f32)))
    assert err_f32 < 2e-1, f"f32 max abs err too large: {err_f32}"

    print("KERNEL_OK")
</pallas_src>

<mosaic_0001>
module attributes {stable_mosaic.version = 11 : i64} {
  func.func @nb1d_kernel(%arg0: i32, %arg1: i32, %arg2: memref<1x30x16x128xf32, #tpu.memory_space<vmem>>, %arg3: memref<4x128x384xbf16, #tpu.memory_space<vmem>>, %arg4: memref<6x128xf32, #tpu.memory_space<vmem>>, %arg5: memref<1x8x16x128xf32, #tpu.memory_space<vmem>>) attributes {dimension_semantics = [#tpu.dimension_semantics<parallel>, #tpu.dimension_semantics<parallel>], iteration_bounds = array<i64: 2, 3>, scalar_prefetch = 0 : i64, scratch_operands = 0 : i64, tpu.core_type = #tpu.core_type<tc>, window_params = [{transform_indices = @transform_0, window_bounds = array<i64: 1, 30, 16, 128>}, {pipeline_mode = #tpu.pipeline_mode<synchronous>, transform_indices = @transform_1, window_bounds = array<i64: 4, 128, 384>}, {pipeline_mode = #tpu.pipeline_mode<synchronous>, transform_indices = @transform_2, window_bounds = array<i64: 6, 128>}, {transform_indices = @transform_3, window_bounds = array<i64: 1, 8, 16, 128>}]} {
    %c8_i32 = arith.constant 8 : i32
    %0 = arith.muli %arg1, %c8_i32 : i32
    %1 = tpu.assume_multiple %0, 8 : i32
    %c0 = arith.constant 0 : index
    %2 = arith.index_cast %1 : i32 to index
    %c0_0 = arith.constant 0 : index
    %c0_1 = arith.constant 0 : index
    %3 = vector.load %arg2[%c0, %2, %c0_0, %c0_1] : memref<1x30x16x128xf32, #tpu.memory_space<vmem>>, vector<1x14x16x128xf32>
    %4 = vector.shape_cast %3 : vector<1x14x16x128xf32> to vector<14x16x128xf32>
    %5 = tpu.iota {dimensions = array<i32: 1>} : vector<1x16x1xi32>
    %c-2_i32 = arith.constant -2 : i32
    %6 = vector.broadcast %c-2_i32 : i32 to vector<1x16x1xi32>
    %7 = arith.addi %5, %6 : vector<1x16x1xi32>
    %c0_i32 = arith.constant 0 : i32
    %8 = vector.broadcast %c0_i32 : i32 to vector<1x16x1xi32>
    %9 = arith.cmpi sge, %7, %8 : vector<1x16x1xi32>
    %c-2_i32_2 = arith.constant -2 : i32
    %10 = vector.broadcast %c-2_i32_2 : i32 to vector<1x16x1xi32>
    %11 = arith.addi %5, %10 : vector<1x16x1xi32>
    %c16_i32 = arith.constant 16 : i32
    %12 = vector.broadcast %c16_i32 : i32 to vector<1x16x1xi32>
    %13 = arith.cmpi slt, %11, %12 : vector<1x16x1xi32>
    %14 = arith.andi %9, %13 : vector<1x16x1xi1>
    %c-1_i32 = arith.constant -1 : i32
    %15 = vector.broadcast %c-1_i32 : i32 to vector<1x16x1xi32>
    %16 = arith.addi %5, %15 : vector<1x16x1xi32>
    %c0_i32_3 = arith.constant 0 : i32
    %17 = vector.broadcast %c0_i32_3 : i32 to vector<1x16x1xi32>
    %18 = arith.cmpi sge, %16, %17 : vector<1x16x1xi32>
    %c-1_i32_4 = arith.constant -1 : i32
    %19 = vector.broadcast %c-1_i32_4 : i32 to vector<1x16x1xi32>
    %20 = arith.addi %5, %19 : vector<1x16x1xi32>
    %c16_i32_5 = arith.constant 16 : i32
    %21 = vector.broadcast %c16_i32_5 : i32 to vector<1x16x1xi32>
    %22 = arith.cmpi slt, %20, %21 : vector<1x16x1xi32>
    %23 = arith.andi %18, %22 : vector<1x16x1xi1>
    %c1_i32 = arith.constant 1 : i32
    %24 = vector.broadcast %c1_i32 : i32 to vector<1x16x1xi32>
    %25 = arith.addi %5, %24 : vector<1x16x1xi32>
    %c0_i32_6 = arith.constant 0 : i32
    %26 = vector.broadcast %c0_i32_6 : i32 to vector<1x16x1xi32>
    %27 = arith.cmpi sge, %25, %26 : vector<1x16x1xi32>
    %c1_i32_7 = arith.constant 1 : i32
    %28 = vector.broadcast %c1_i32_7 : i32 to vector<1x16x1xi32>
    %29 = arith.addi %5, %28 : vector<1x16x1xi32>
    %c16_i32_8 = arith.constant 16 : i32
    %30 = vector.broadcast %c16_i32_8 : i32 to vector<1x16x1xi32>
    %31 = arith.cmpi slt, %29, %30 : vector<1x16x1xi32>
    %32 = arith.andi %27, %31 : vector<1x16x1xi1>
    %c2_i32 = arith.constant 2 : i32
    %33 = vector.broadcast %c2_i32 : i32 to vector<1x16x1xi32>
    %34 = arith.addi %5, %33 : vector<1x16x1xi32>
    %c0_i32_9 = arith.constant 0 : i32
    %35 = vector.broadcast %c0_i32_9 : i32 to vector<1x16x1xi32>
    %36 = arith.cmpi sge, %34, %35 : vector<1x16x1xi32>
    %c2_i32_10 = arith.constant 2 : i32
    %37 = vector.broadcast %c2_i32_10 : i32 to vector<1x16x1xi32>
    %38 = arith.addi %5, %37 : vector<1x16x1xi32>
    %c16_i32_11 = arith.constant 16 : i32
    %39 = vector.broadcast %c16_i32_11 : i32 to vector<1x16x1xi32>
    %40 = arith.cmpi slt, %38, %39 : vector<1x16x1xi32>
    %41 = arith.andi %36, %40 : vector<1x16x1xi1>
    %c0_12 = arith.constant 0 : index
    %c0_13 = arith.constant 0 : index
    %42 = vector.load %arg4[%c0_12, %c0_13] : memref<6x128xf32, #tpu.memory_space<vmem>>, vector<1x128xf32>
    %43 = vector.shape_cast %42 : vector<1x128xf32> to vector<1x1x128xf32>
    %44 = arith.truncf %4 : vector<14x16x128xf32> to vector<14x16x128xbf16>
    %45 = vector.shape_cast %44 : vector<14x16x128xbf16> to vector<224x128xbf16>
    %c0_14 = arith.constant 0 : index
    %c0_15 = arith.constant 0 : index
    %c0_16 = arith.constant 0 : index
    %46 = vector.load %arg3[%c0_14, %c0_15, %c0_16] : memref<4x128x384xbf16, #tpu.memory_space<vmem>>, vector<1x128x384xbf16>
    %47 = vector.shape_cast %46 : vector<1x128x384xbf16> to vector<128x384xbf16>
    %cst = arith.constant dense<0.000000e+00> : vector<224x384xf32>
    %48 = tpu.matmul %45, %47, %cst {dimension_numbers = #tpu.dot_dimension_numbers<[1], [0], [0], [1], [0, 0, 1, 1], [], []>} : vector<224x128xbf16>, vector<128x384xbf16>, vector<224x384xf32> -> vector<224x384xf32>
    %49 = vector.shape_cast %48 : vector<224x384xf32> to vector<14x16x384xf32>
    %50 = vector.extract_strided_slice %49 {offsets = [1, 0, 128], sizes = [12, 16, 128], strides = [1, 1, 1]} : vector<14x16x384xf32> to vector<12x16x128xf32>
    %51 = vector.broadcast %43 : vector<1x1x128xf32> to vector<12x16x128xf32>
    %52 = arith.addf %51, %50 : vector<12x16x128xf32>
    %53 = vector.extract_strided_slice %49 {offsets = [0, 0, 0], sizes = [12, 16, 128], strides = [1, 1, 1]} : vector<14x16x384xf32> to vector<12x16x128xf32>
    %54 = arith.addf %52, %53 : vector<12x16x128xf32>
    %55 = vector.extract_strided_slice %49 {offsets = [2, 0, 256], sizes = [12, 16, 128], strides = [1, 1, 1]} : vector<14x16x384xf32> to vector<12x16x128xf32>
    %56 = arith.addf %54, %55 : vector<12x16x128xf32>
    %cst_17 = arith.constant 0.000000e+00 : f32
    %57 = vector.broadcast %cst_17 : f32 to vector<12x16x128xf32>
    %58 = arith.maximumf %56, %57 : vector<12x16x128xf32>
    %59 = arith.truncf %58 : vector<12x16x128xf32> to vector<12x16x128xbf16>
    %60 = vector.shape_cast %59 : vector<12x16x128xbf16> to vector<192x128xbf16>
    %c1 = arith.constant 1 : index
    %c0_18 = arith.constant 0 : index
    %c0_19 = arith.constant 0 : index
    %61 = vector.load %arg3[%c1, %c0_18, %c0_19] : memref<4x128x384xbf16, #tpu.memory_space<vmem>>, vector<1x128x384xbf16>
    %62 = vector.shape_cast %61 : vector<1x128x384xbf16> to vector<128x384xbf16>
    %cst_20 = arith.constant dense<0.000000e+00> : vector<192x384xf32>
    %63 = tpu.matmul %60, %62, %cst_20 {dimension_numbers = #tpu.dot_dimension_numbers<[1], [0], [0], [1], [0, 0, 1, 1], [], []>} : vector<192x128xbf16>, vector<128x384xbf16>, vector<192x384xf32> -> vector<192x384xf32>
    %64 = vector.shape_cast %63 : vector<192x384xf32> to vector<12x16x384xf32>
    %65 = vector.extract_strided_slice %64 {offsets = [0, 0, 128], sizes = [12, 16, 128], strides = [1, 1, 1]} : vector<12x16x384xf32> to vector<12x16x128xf32>
    %66 = vector.extract_strided_slice %64 {offsets = [0, 0, 0], sizes = [12, 16, 128], strides = [1, 1, 1]} : vector<12x16x384xf32> to vector<12x16x128xf32>
    %c1_i32_21 = arith.constant 1 : i32
    %67 = tpu.dynamic_rotate %66 by %c1_i32_21 dim 1 : vector<12x16x128xf32>, i32 -> vector<12x16x128xf32>
    %cst_22 = arith.constant 0.000000e+00 : f32
    %68 = vector.shape_cast %23 : vector<1x16x1xi1> to vector<1x16x1xi1>
    %69 = vector.broadcast %68 : vector<1x16x1xi1> to vector<12x16x128xi1>
    %70 = vector.broadcast %cst_22 : f32 to vector<12x16x128xf32>
    %71 = arith.select %69, %67, %70 : vector<12x16x128xi1>, vector<12x16x128xf32>
    %72 = arith.addf %65, %71 : vector<12x16x128xf32>
    %73 = vector.extract_strided_slice %64 {offsets = [0, 0, 256], sizes = [12, 16, 128], strides = [1, 1, 1]} : vector<12x16x384xf32> to vector<12x16x128xf32>
    %c15_i32 = arith.constant 15 : i32
    %74 = tpu.dynamic_rotate %73 by %c15_i32 dim 1 : vector<12x16x128xf32>, i32 -> vector<12x16x128xf32>
    %cst_23 = arith.constant 0.000000e+00 : f32
    %75 = vector.shape_cast %32 : vector<1x16x1xi1> to vector<1x16x1xi1>
    %76 = vector.broadcast %75 : vector<1x16x1xi1> to vector<12x16x128xi1>
    %77 = vector.broadcast %cst_23 : f32 to vector<12x16x128xf32>
    %78 = arith.select %76, %74, %77 : vector<12x16x128xi1>, vector<12x16x128xf32>
    %79 = arith.addf %72, %78 : vector<12x16x128xf32>
    %c1_24 = arith.constant 1 : index
    %c0_25 = arith.constant 0 : index
    %80 = vector.load %arg4[%c1_24, %c0_25] : memref<6x128xf32, #tpu.memory_space<vmem>>, vector<1x128xf32>
    %81 = vector.shape_cast %80 : vector<1x128xf32> to vector<1x1x128xf32>
    %82 = vector.broadcast %81 : vector<1x1x128xf32> to vector<12x16x128xf32>
    %83 = arith.mulf %79, %82 : vector<12x16x128xf32>
    %c2 = arith.constant 2 : index
    %c0_26 = arith.constant 0 : index
    %84 = vector.load %arg4[%c2, %c0_26] : memref<6x128xf32, #tpu.memory_space<vmem>>, vector<1x128xf32>
    %85 = vector.shape_cast %84 : vector<1x128xf32> to vector<1x1x128xf32>
    %86 = vector.broadcast %85 : vector<1x1x128xf32> to vector<12x16x128xf32>
    %87 = arith.addf %83, %86 : vector<12x16x128xf32>
    %cst_27 = arith.constant 0.000000e+00 : f32
    %88 = vector.broadcast %cst_27 : f32 to vector<12x16x128xf32>
    %89 = arith.maximumf %87, %88 : vector<12x16x128xf32>
    %90 = tpu.iota {dimensions = array<i32: 0>} : vector<12x1x1xi32>
    %c2_i32_28 = arith.constant 2 : i32
    %91 = arith.subi %1, %c2_i32_28 : i32
    %92 = vector.broadcast %91 : i32 to vector<12x1x1xi32>
    %93 = arith.addi %92, %90 : vector<12x1x1xi32>
    %c0_i32_29 = arith.constant 0 : i32
    %94 = vector.broadcast %c0_i32_29 : i32 to vector<12x1x1xi32>
    %95 = arith.cmpi sge, %93, %94 : vector<12x1x1xi32>
    %c20_i32 = arith.constant 20 : i32
    %96 = vector.broadcast %c20_i32 : i32 to vector<12x1x1xi32>
    %97 = arith.cmpi slt, %93, %96 : vector<12x1x1xi32>
    %98 = arith.andi %95, %97 : vector<12x1x1xi1>
    %cst_30 = arith.constant 0.000000e+00 : f32
    %99 = vector.shape_cast %98 : vector<12x1x1xi1> to vector<12x1x1xi1>
    %100 = vector.broadcast %99 : vector<12x1x1xi1> to vector<12x16x128xi1>
    %101 = vector.broadcast %cst_30 : f32 to vector<12x16x128xf32>
    %102 = arith.select %100, %89, %101 : vector<12x16x128xi1>, vector<12x16x128xf32>
    %c3 = arith.constant 3 : index
    %c0_31 = arith.constant 0 : index
    %103 = vector.load %arg4[%c3, %c0_31] : memref<6x128xf32, #tpu.memory_space<vmem>>, vector<1x128xf32>
    %104 = vector.shape_cast %103 : vector<1x128xf32> to vector<1x1x128xf32>
    %105 = arith.truncf %102 : vector<12x16x128xf32> to vector<12x16x128xbf16>
    %106 = vector.shape_cast %105 : vector<12x16x128xbf16> to vector<192x128xbf16>
    %c2_32 = arith.constant 2 : index
    %c0_33 = arith.constant 0 : index
    %c0_34 = arith.constant 0 : index
    %107 = vector.load %arg3[%c2_32, %c0_33, %c0_34] : memref<4x128x384xbf16, #tpu.memory_space<vmem>>, vector<1x128x384xbf16>
    %108 = vector.shape_cast %107 : vector<1x128x384xbf16> to vector<128x384xbf16>
    %cst_35 = arith.constant dense<0.000000e+00> : vector<192x384xf32>
    %109 = tpu.matmul %106, %108, %cst_35 {dimension_numbers = #tpu.dot_dimension_numbers<[1], [0], [0], [1], [0, 0, 1, 1], [], []>} : vector<192x128xbf16>, vector<128x384xbf16>, vector<192x384xf32> -> vector<192x384xf32>
    %110 = vector.shape_cast %109 : vector<192x384xf32> to vector<12x16x384xf32>
    %111 = vector.extract_strided_slice %110 {offsets = [2, 0, 128], sizes = [8, 16, 128], strides = [1, 1, 1]} : vector<12x16x384xf32> to vector<8x16x128xf32>
    %112 = vector.broadcast %104 : vector<1x1x128xf32> to vector<8x16x128xf32>
    %113 = arith.addf %112, %111 : vector<8x16x128xf32>
    %114 = vector.extract_strided_slice %110 {offsets = [0, 0, 0], sizes = [8, 16, 128], strides = [1, 1, 1]} : vector<12x16x384xf32> to vector<8x16x128xf32>
    %115 = arith.addf %113, %114 : vector<8x16x128xf32>
    %116 = vector.extract_strided_slice %110 {offsets = [4, 0, 256], sizes = [8, 16, 128], strides = [1, 1, 1]} : vector<12x16x384xf32> to vector<8x16x128xf32>
    %117 = arith.addf %115, %116 : vector<8x16x128xf32>
    %cst_36 = arith.constant 0.000000e+00 : f32
    %118 = vector.broadcast %cst_36 : f32 to vector<8x16x128xf32>
    %119 = arith.maximumf %117, %118 : vector<8x16x128xf32>
    %120 = arith.truncf %119 : vector<8x16x128xf32> to vector<8x16x128xbf16>
    %121 = vector.shape_cast %120 : vector<8x16x128xbf16> to vector<128x128xbf16>
    %c3_37 = arith.constant 3 : index
    %c0_38 = arith.constant 0 : index
    %c0_39 = arith.constant 0 : index
    %122 = vector.load %arg3[%c3_37, %c0_38, %c0_39] : memref<4x128x384xbf16, #tpu.memory_space<vmem>>, vector<1x128x384xbf16>
    %123 = vector.shape_cast %122 : vector<1x128x384xbf16> to vector<128x384xbf16>
    %cst_40 = arith.constant dense<0.000000e+00> : vector<128x384xf32>
    %124 = tpu.matmul %121, %123, %cst_40 {dimension_numbers = #tpu.dot_dimension_numbers<[1], [0], [0], [1], [0, 0, 1, 1], [], []>} : vector<128x128xbf16>, vector<128x384xbf16>, vector<128x384xf32> -> vector<128x384xf32>
    %125 = vector.shape_cast %124 : vector<128x384xf32> to vector<8x16x384xf32>
    %126 = vector.extract_strided_slice %125 {offsets = [0, 0, 128], sizes = [8, 16, 128], strides = [1, 1, 1]} : vector<8x16x384xf32> to vector<8x16x128xf32>
    %127 = vector.extract_strided_slice %125 {offsets = [0, 0, 0], sizes = [8, 16, 128], strides = [1, 1, 1]} : vector<8x16x384xf32> to vector<8x16x128xf32>
    %c2_i32_41 = arith.constant 2 : i32
    %128 = tpu.dynamic_rotate %127 by %c2_i32_41 dim 1 : vector<8x16x128xf32>, i32 -> vector<8x16x128xf32>
    %cst_42 = arith.constant 0.000000e+00 : f32
    %129 = vector.shape_cast %14 : vector<1x16x1xi1> to vector<1x16x1xi1>
    %130 = vector.broadcast %129 : vector<1x16x1xi1> to vector<8x16x128xi1>
    %131 = vector.broadcast %cst_42 : f32 to vector<8x16x128xf32>
    %132 = arith.select %130, %128, %131 : vector<8x16x128xi1>, vector<8x16x128xf32>
    %133 = arith.addf %126, %132 : vector<8x16x128xf32>
    %134 = vector.extract_strided_slice %125 {offsets = [0, 0, 256], sizes = [8, 16, 128], strides = [1, 1, 1]} : vector<8x16x384xf32> to vector<8x16x128xf32>
    %c14_i32 = arith.constant 14 : i32
    %135 = tpu.dynamic_rotate %134 by %c14_i32 dim 1 : vector<8x16x128xf32>, i32 -> vector<8x16x128xf32>
    %cst_43 = arith.constant 0.000000e+00 : f32
    %136 = vector.shape_cast %41 : vector<1x16x1xi1> to vector<1x16x1xi1>
    %137 = vector.broadcast %136 : vector<1x16x1xi1> to vector<8x16x128xi1>
    %138 = vector.broadcast %cst_43 : f32 to vector<8x16x128xf32>
    %139 = arith.select %137, %135, %138 : vector<8x16x128xi1>, vector<8x16x128xf32>
    %140 = arith.addf %133, %139 : vector<8x16x128xf32>
    %c4 = arith.constant 4 : index
    %c0_44 = arith.constant 0 : index
    %141 = vector.load %arg4[%c4, %c0_44] : memref<6x128xf32, #tpu.memory_space<vmem>>, vector<1x128xf32>
    %142 = vector.shape_cast %141 : vector<1x128xf32> to vector<1x1x128xf32>
    %143 = vector.broadcast %142 : vector<1x1x128xf32> to vector<8x16x128xf32>
    %144 = arith.mulf %140, %143 : vector<8x16x128xf32>
    %c5 = arith.constant 5 : index
    %c0_45 = arith.constant 0 : index
    %145 = vector.load %arg4[%c5, %c0_45] : memref<6x128xf32, #tpu.memory_space<vmem>>, vector<1x128xf32>
    %146 = vector.shape_cast %145 : vector<1x128xf32> to vector<1x1x128xf32>
    %147 = vector.broadcast %146 : vector<1x1x128xf32> to vector<8x16x128xf32>
    %148 = arith.addf %144, %147 : vector<8x16x128xf32>
    %149 = vector.extract_strided_slice %4 {offsets = [3, 0, 0], sizes = [8, 16, 128], strides = [1, 1, 1]} : vector<14x16x128xf32> to vector<8x16x128xf32>
    %150 = arith.addf %148, %149 : vector<8x16x128xf32>
    %cst_46 = arith.constant 0.000000e+00 : f32
    %151 = vector.broadcast %cst_46 : f32 to vector<8x16x128xf32>
    %152 = arith.maximumf %150, %151 : vector<8x16x128xf32>
    %c0_47 = arith.constant 0 : index
    %c0_48 = arith.constant 0 : index
    %c0_49 = arith.constant 0 : index
    %c0_50 = arith.constant 0 : index
    %153 = vector.load %arg5[%c0_47, %c0_48, %c0_49, %c0_50] : memref<1x8x16x128xf32, #tpu.memory_space<vmem>>, vector<1x8x16x128xf32>
    %154 = vector.shape_cast %153 : vector<1x8x16x128xf32> to vector<8x16x128xf32>
    %155 = vector.shape_cast %152 : vector<8x16x128xf32> to vector<1x8x16x128xf32>
    tpu.vector_store %arg5[%c0_47, %c0_48, %c0_49, %c0_50], %155 {strides = array<i32>} : memref<1x8x16x128xf32, #tpu.memory_space<vmem>>, vector<1x8x16x128xf32>,
    return
  }
  func.func @transform_0(%arg0: i32, %arg1: i32) -> (i32, i32, i32, i32) {
    %c0_i32 = arith.constant 0 : i32
    %c0_i32_0 = arith.constant 0 : i32
    %c0_i32_1 = arith.constant 0 : i32
    %c0_i32_2 = arith.constant 0 : i32
    return %arg0, %c0_i32, %c0_i32_0, %c0_i32_1 : i32, i32, i32, i32
  }
  func.func @transform_1(%arg0: i32, %arg1: i32) -> (i32, i32, i32) {
    %c0_i32 = arith.constant 0 : i32
    %c0_i32_0 = arith.constant 0 : i32
    %c0_i32_1 = arith.constant 0 : i32
    %c0_i32_2 = arith.constant 0 : i32
    return %c0_i32, %c0_i32_0, %c0_i32_1 : i32, i32, i32
  }
  func.func @transform_2(%arg0: i32, %arg1: i32) -> (i32, i32) {
    %c0_i32 = arith.constant 0 : i32
    %c0_i32_0 = arith.constant 0 : i32
    %c0_i32_1 = arith.constant 0 : i32
    return %c0_i32, %c0_i32_0 : i32, i32
  }
  func.func @transform_3(%arg0: i32, %arg1: i32) -> (i32, i32, i32, i32) {
    %c0_i32 = arith.constant 0 : i32
    %c0_i32_0 = arith.constant 0 : i32
    %c0_i32_1 = arith.constant 0 : i32
    return %arg0, %arg1, %c0_i32, %c0_i32_0 : i32, i32, i32, i32
  }
}

</mosaic_0001>

<llo_original>
// kernel: tpu_custom_call.1
$region0: #{tpu_custom_call.1}
  #allocation0 [shape = 'u32[]', space=smem, size = 0x4, offset = 0x4, fixed_abs, tag = 'smem constant byte address 0x4 - core index']
  #allocation1 [shape = 'u32[144,128]{1,0:T(1,128)}', space=vmem, size = 0x12000, scoped, tag = 'internal scratch']
  %s0 = inlined_call_operand.hbm [shape: f32[2,30,16,128], index: 0, kind: input, shape index: {}]
  %s1 = inlined_call_operand.hbm [shape: bf16[4,128,384], index: 1, kind: input, shape index: {}]
  %s2 = inlined_call_operand.hbm [shape: f32[6,128], index: 2, kind: input, shape index: {}]
  %s3 = inlined_call_operand.hbm [shape: f32[2,24,16,128], index: 3, kind: output, shape index: {}]
  %s4 = sld [smem:[#allocation0]]
  $region57: #{tpu_custom_call.1} parent=0
    _
  %s6 = ssub.s32 1, %s4
  %s7 = scalar_select 0, %s6, %s4
  $region1: #{tpu_custom_call.1} parent=0
    #allocation2 [shape = 'u8[491520]{0}', space=vmem, size = 0x78000, scoped, tag = 'input window, operand 0']
    #allocation3 [shape = 's32[2]{0}', space=sflag, size = 0x8, scoped, tag = 'scoped memory for tpu_custom_call.1']
    #allocation4 [shape = 's32[2]{0}', space=sflag, size = 0x8, scoped, tag = 'scoped memory for tpu_custom_call.1']
    #allocation5 [shape = 'u8[393216]{0}', space=vmem, size = 0x60000, scoped, tag = 'input window, operand 1, single buffered']
    #allocation6 [shape = 's32[1]{0}', space=sflag, size = 0x4, scoped, tag = 'scoped memory for tpu_custom_call.1']
    #allocation7 [shape = 'u8[4096]{0}', space=vmem, size = 0x1000, scoped, tag = 'input window, operand 2, single buffered']
    #allocation8 [shape = 'u8[131072]{0}', space=vmem, size = 0x20000, scoped, tag = 'output window, operand 0']
    %8 = vsyncpa [#allocation3], 0
    %s9 = scalar_lea.sflag [#allocation3], 1
    %10 = vsyncpa %s9, 0
    %11 = vsyncpa [#allocation6], 0
    %12 = vsyncpa [#allocation4], 0
    %s13 = scalar_lea.sflag [#allocation4], 1
    %14 = vsyncpa %s13, 0
    loop: start=0, step=1, limit=8
    $region2: #{tpu_custom_call.1} parent=1 // loop_pre_header
      _
    $region3: #{tpu_custom_call.1} parent=1 // loop_header
      %s16 = sphi 0, %s20
      %p17 = scmp.ge.s32.totalorder %s16, 8
      %s23 = sphi 0, %s35
      %s24 = sphi 0, %s31
      %s25 = sphi 0, %s23
      %s26 = sphi 0, %s24
      %s27 = sphi 0, %s25
      %s28 = sphi 0, %s26
      %s38 = sphi 0, %s40
      %s41 = sphi 0, %s38
      %s42 = sphi 0, %s41
      %s58 = sphi 0, %s42
      %s62 = sphi 0, %s62
      %s64 = sphi 0, %s62
      %s65 = sphi 0, %s64
      %s79 = sphi 0, %s65
      %s83 = sphi 0, %s83
      %s85 = sphi 0, %s83
      %s86 = sphi 0, %s85
      %s100 = sphi 0, %s86
      %s108 = sphi 0, %s110
      %s111 = sphi 0, %s108
      %s112 = sphi 0, %s111
      %s128 = sphi 0, %s112
    $region4: #{tpu_custom_call.1} parent=1 // loop_header_branch
      %19 = sbr.rel (%p17) target = $region8
    $region5: #{tpu_custom_call.1} parent=1 // loop_body
      %s21 = ssub.s32 %s16, 1
      %s22 = ssub.s32 %s16, 2
      %s29 = sadd.s32 1, %s24
      %p30 = scmp.ge.s32.totalorder %s29, 3
      %s31 = scalar_select %p30, 0, %s29
      %s32 = sadd.s32 1, %s23
      %s33 = scalar_select %p30, %s32, %s23
      %p34 = scmp.ge.s32.totalorder %s33, 2
      %s35 = scalar_select %p34, 0, %s33
      %s36 = ssub.s32 %s23, %s35
      %p37 = scmp.eq.s32.totalorder %s36, 0
      %s39 = sadd.s32 %s38, 1
      %s40 = scalar_select %p37, %s38, %s39
      %p43 = pneg %p37
      %p44 = scmp.eq.s32.totalorder %s16, 5
      %p45 = por %p43, %p44
      %p46 = scmp.ne.s32.totalorder %s38, %s41
      %p47 = scmp.eq.s32.totalorder %s16, 0
      %p48 = por %p46, %p47
      %p49 = scmp.ne.s32.totalorder %s38, %s41
      %p50 = scmp.eq.s32.totalorder %s21, 5
      %p51 = por %p49, %p50
      %p52 = scmp.ne.s32.totalorder %s41, %s42
      %p53 = scmp.eq.s32.totalorder %s21, 0
      %p54 = por %p52, %p53
      %p55 = scmp.ne.s32.totalorder %s41, %s42
      %p56 = scmp.eq.s32.totalorder %s22, 5
      %p57 = por %p55, %p56
      %p59 = scmp.ne.s32.totalorder %s42, %s58
      %p60 = scmp.eq.s32.totalorder %s22, 0
      %p61 = por %p59, %p60
      %s63 = sadd.s32 %s62, 1
      %p66 = scmp.eq.s32.totalorder %s16, 5
      %p67 = scmp.ne.s32.totalorder %s62, %s64
      %p68 = scmp.eq.s32.totalorder %s16, 0
      %p69 = por %p67, %p68
      %p70 = scmp.ne.s32.totalorder %s62, %s64
      %p71 = scmp.eq.s32.totalorder %s21, 5
      %p72 = por %p70, %p71
      %p73 = scmp.ne.s32.totalorder %s64, %s65
      %p74 = scmp.eq.s32.totalorder %s21, 0
      %p75 = por %p73, %p74
      %p76 = scmp.ne.s32.totalorder %s64, %s65
      %p77 = scmp.eq.s32.totalorder %s22, 5
      %p78 = por %p76, %p77
      %p80 = scmp.ne.s32.totalorder %s65, %s79
      %p81 = scmp.eq.s32.totalorder %s22, 0
      %p82 = por %p80, %p81
      %s84 = sadd.s32 %s83, 1
      %p87 = scmp.eq.s32.totalorder %s16, 5
      %p88 = scmp.ne.s32.totalorder %s83, %s85
      %p89 = scmp.eq.s32.totalorder %s16, 0
      %p90 = por %p88, %p89
      %p91 = scmp.ne.s32.totalorder %s83, %s85
      %p92 = scmp.eq.s32.totalorder %s21, 5
      %p93 = por %p91, %p92
      %p94 = scmp.ne.s32.totalorder %s85, %s86
      %p95 = scmp.eq.s32.totalorder %s21, 0
      %p96 = por %p94, %p95
      %p97 = scmp.ne.s32.totalorder %s85, %s86
      %p98 = scmp.eq.s32.totalorder %s22, 5
      %p99 = por %p97, %p98
      %p101 = scmp.ne.s32.totalorder %s86, %s100
      %p102 = scmp.eq.s32.totalorder %s22, 0
      %p103 = por %p101, %p102
      %s104 = ssub.s32 %s23, %s35
      %s105 = ssub.s32 %s24, %s31
      %s106 = sor.u32 %s104, %s105
      %p107 = scmp.eq.s32.totalorder %s106, 0
      %s109 = sadd.s32 %s108, 1
      %s110 = scalar_select %p107, %s108, %s109
      %p113 = pneg %p107
      %p114 = scmp.eq.s32.totalorder %s16, 5
      %p115 = por %p113, %p114
      %p116 = scmp.ne.s32.totalorder %s108, %s111
      %p117 = scmp.eq.s32.totalorder %s16, 0
      %p118 = por %p116, %p117
      %p119 = scmp.ne.s32.totalorder %s108, %s111
      %p120 = scmp.eq.s32.totalorder %s21, 5
      %p121 = por %p119, %p120
      %p122 = scmp.ne.s32.totalorder %s111, %s112
      %p123 = scmp.eq.s32.totalorder %s21, 0
      %p124 = por %p122, %p123
      %p125 = scmp.ne.s32.totalorder %s111, %s112
      %p126 = scmp.eq.s32.totalorder %s22, 5
      %p127 = por %p125, %p126
      %p129 = scmp.ne.s32.totalorder %s112, %s128
      %p130 = scmp.eq.s32.totalorder %s22, 0
      %p131 = por %p129, %p130
      %p132 = scmp.le.s32.totalorder 1, %s16
      %p133 = scmp.lt.s32.totalorder %s16, 7
      %p134 = pnand %p132, %p133
      %p135 = pneg %p134
      // Predicated region
      $region9: #{tpu_custom_call.1} parent=5 // pred_check
        _
      $region10: #{tpu_custom_call.1} parent=5 // pred_check_branch
        %137 = sbr.rel (%p134) target = $region12
      $region11: #{tpu_custom_call.1} parent=5 // pred_region
        %s138 = ssub.s32 %s16, 1
        // Predicated region
        $region13: #{tpu_custom_call.1} parent=11 // pred_check
          %p139 = pneg %p75
        $region14: #{tpu_custom_call.1} parent=11 // pred_check_branch
          %141 = sbr.rel (%p139) target = $region16
        $region15: #{tpu_custom_call.1} parent=11 // pred_region
          %s143 = ssub.s32 12288, 12288
          %144 = vsyncadd [#allocation6], %s143
          %s145 = sshll.u32 [#allocation5], 4
          %s146 = int_to_ptr.vmem [resolvable:$true] %s145
          %151 = dma.hbm_to_vmem [thread:$0]  %s1, 12288, %s146, [#allocation6], 192, 192, 12
        $region16: #{tpu_custom_call.1} parent=11 // pred_fallthru
          _
        // Predicated region
        $region17: #{tpu_custom_call.1} parent=11 // pred_check
          %p152 = pneg %p96
        $region18: #{tpu_custom_call.1} parent=11 // pred_check_branch
          %154 = sbr.rel (%p152) target = $region20
        $region19: #{tpu_custom_call.1} parent=11 // pred_region
          %s156 = ssub.s32 128, 128
          %157 = vsyncadd [#allocation6], %s156
          %s159 = sshll.u32 [#allocation7], 4
          %s160 = int_to_ptr.vmem [resolvable:$true] %s159
          %162 = dma.hbm_to_vmem [thread:$0]  %s2, 128, %s160, [#allocation6]
        $region20: #{tpu_custom_call.1} parent=11 // pred_fallthru
          _
      $region12: #{tpu_custom_call.1} parent=5 // pred_fallthru
        _
      %p163 = scmp.lt.s32.totalorder %s16, 6
      // Predicated region
      $region21: #{tpu_custom_call.1} parent=5 // pred_check
        %p164 = pneg %p163
      $region22: #{tpu_custom_call.1} parent=5 // pred_check_branch
        %166 = sbr.rel (%p164) target = $region24
      $region23: #{tpu_custom_call.1} parent=5 // pred_region
        // Predicated region
        $region25: #{tpu_custom_call.1} parent=23 // pred_check
          %p167 = pneg %p48
        $region26: #{tpu_custom_call.1} parent=23 // pred_check_branch
          %169 = sbr.rel (%p167) target = $region28
        $region27: #{tpu_custom_call.1} parent=23 // pred_region
          %s170 = sand.u32 %s38, 1
          %s171 = scalar_lea.sflag [#allocation3], %s170
          %s172 = sand.u32 %s38, 1
          %s173 = smul.addr %s172, 480
          %s174 = scalar_lea.vmem [#allocation2], %s173
          %s176 = ssub.s32 7680, 7680
          %177 = vsyncadd %s171, %s176
          %s178 = smul.addr %s23, 60
          %s179 = smul.addr %s178, 128
          %s180 = scalar_lea.hbm %s0, %s179
          %s181 = sshll.u32 %s174, 4
          %s182 = int_to_ptr.vmem [resolvable:$true] %s181
          %187 = dma.hbm_to_vmem [thread:$0]  %s180, 7680, %s182, %s171, 128, 128, 8
        $region28: #{tpu_custom_call.1} parent=23 // pred_fallthru
          _
      $region24: #{tpu_custom_call.1} parent=5 // pred_fallthru
        _
      %p188 = scmp.le.s32.totalorder 1, %s16
      %p189 = scmp.lt.s32.totalorder %s16, 7
      %p190 = pnand %p188, %p189
      %p191 = pneg %p190
      // Predicated region
      $region29: #{tpu_custom_call.1} parent=5 // pred_check
        _
      $region30: #{tpu_custom_call.1} parent=5 // pred_check_branch
        %193 = sbr.rel (%p190) target = $region32
      $region31: #{tpu_custom_call.1} parent=5 // pred_region
        %s194 = ssub.s32 %s16, 1
        %s195 = sand.u32 %s41, 1
        %s196 = scalar_lea.sflag [#allocation3], %s195
        %s197 = sand.u32 %s41, 1
        %s198 = smul.addr %s197, 480
        %s199 = scalar_lea.vmem [#allocation2], %s198
        // Predicated region
        $region33: #{tpu_custom_call.1} parent=31 // pred_check
          %p200 = pneg %p54
        $region34: #{tpu_custom_call.1} parent=31 // pred_check_branch
          %202 = sbr.rel (%p200) target = $region36
        $region35: #{tpu_custom_call.1} parent=31 // pred_region
          %203 = dma.done %s196, 7680
        $region36: #{tpu_custom_call.1} parent=31 // pred_fallthru
          _
        // Predicated region
        $region37: #{tpu_custom_call.1} parent=31 // pred_check
          %p204 = pneg %p75
        $region38: #{tpu_custom_call.1} parent=31 // pred_check_branch
          %206 = sbr.rel (%p204) target = $region40
        $region39: #{tpu_custom_call.1} parent=31 // pred_region
          %207 = dma.done [#allocation6], 12288
        $region40: #{tpu_custom_call.1} parent=31 // pred_fallthru
          _
        // Predicated region
        $region41: #{tpu_custom_call.1} parent=31 // pred_check
          %p208 = pneg %p96
        $region42: #{tpu_custom_call.1} parent=31 // pred_check_branch
          %210 = sbr.rel (%p208) target = $region44
        $region43: #{tpu_custom_call.1} parent=31 // pred_region
          %211 = dma.done [#allocation6], 128
        $region44: #{tpu_custom_call.1} parent=31 // pred_fallthru
          _
        %s212 = sand.u32 %s41, 1
        %s213 = scalar_lea.sflag [#allocation3], %s212
        %s214 = sand.u32 %s41, 1
        %s215 = smul.addr %s214, 480
        %s216 = scalar_lea.vmem [#allocation2], %s215
        %p217 = pneg %p54
        %p218 = pneg %p51
        %p219 = pneg %p75
        %p220 = pneg %p72
        %p221 = pneg %p96
        %p222 = pneg %p93
        %p223 = pneg %p124
        %p224 = pneg %p121
        %s225 = sand.u32 %s111, 1
        %s226 = scalar_lea.sflag [#allocation4], %s225
        %s227 = sand.u32 %s111, 1
        %s228 = smul.addr %s227, 128
        %s229 = scalar_lea.vmem [#allocation8], %s228
        %s230 = smul.u32 8, %s26
        %s232 = smul.u32 %s26, 8
        %s233 = smul.u32 %s232, 16
        %s234 = scalar_lea.vmem %s199, %s233 [#allocation2]
        %v235 = vld [vmem:[%s234] sm:$0xff]
        %v236 = vld [vmem:[%s234 + $0x8] sm:$0xff]
        %v237 = vld [vmem:[%s234 + $0x10] sm:$0xff]
        %v238 = vld [vmem:[%s234 + $0x18] sm:$0xff]
        %v239 = vld [vmem:[%s234 + $0x20] sm:$0xff]
        %v240 = vld [vmem:[%s234 + $0x28] sm:$0xff]
        %v241 = vld [vmem:[%s234 + $0x30] sm:$0xff]
        %v242 = vld [vmem:[%s234 + $0x38] sm:$0xff]
        %v243 = vld [vmem:[%s234 + $0x40] sm:$0xff]
        %v244 = vld [vmem:[%s234 + $0x48] sm:$0xff]
        %v245 = vld [vmem:[%s234 + $0x50] sm:$0xff]
        %v246 = vld [vmem:[%s234 + $0x58] sm:$0xff]
        %v247 = vld [vmem:[%s234 + $0x60] sm:$0xff]
        %v248 = vld [vmem:[%s234 + $0x68] sm:$0xff]
        %v249 = vld [vmem:[%s234 + $0x70] sm:$0xff]
        %v250 = vld [vmem:[%s234 + $0x78] sm:$0xff]
        %v251 = vld [vmem:[%s234 + $0x80] sm:$0xff]
        %v252 = vld [vmem:[%s234 + $0x88] sm:$0xff]
        %v253 = vld [vmem:[%s234 + $0x90] sm:$0xff]
        %v254 = vld [vmem:[%s234 + $0x98] sm:$0xff]
        %v255 = vld [vmem:[%s234 + $0xa0] sm:$0xff]
        %v256 = vld [vmem:[%s234 + $0xa8] sm:$0xff]
        %v257 = vld [vmem:[%s234 + $0xb0] sm:$0xff]
        %v258 = vld [vmem:[%s234 + $0xb8] sm:$0xff]
        %v259 = vld [vmem:[%s234 + $0xc0] sm:$0xff]
        %v260 = vld [vmem:[%s234 + $0xc8] sm:$0xff]
        %v261 = vld [vmem:[%s234 + $0xd0] sm:$0xff]
        %v262 = vld [vmem:[%s234 + $0xd8] sm:$0xff]
        %v263 = vlaneseq
        %v264 = vshrl.u32 %v263, 7
        %v265 = vadd.s32 %v264, 8
        %v266 = vadd.s32 %v264, 4294967294
        %v267 = vadd.s32 %v265, 4294967294
        %vm268 = vcmp.ge.s32.totalorder %v266, 0
        %vm269 = vcmp.ge.s32.totalorder %v267, 0
        %vm270 = vcmp.lt.s32.totalorder %v266, 16
        %vm271 = vcmp.lt.s32.totalorder %v267, 16
        %vm272 = vmand %vm268, %vm270
        %vm273 = vmand %vm269, %vm271
        %v274 = vadd.s32 %v264, 4294967295
        %v275 = vadd.s32 %v265, 4294967295
        %vm276 = vcmp.ge.s32.totalorder %v274, 0
        %vm277 = vcmp.ge.s32.totalorder %v275, 0
        %vm278 = vcmp.lt.s32.totalorder %v274, 16
        %vm279 = vcmp.lt.s32.totalorder %v275, 16
        %vm280 = vmand %vm276, %vm278
        %vm281 = vmand %vm277, %vm279
        %v282 = vadd.s32 %v264, 1
        %v283 = vadd.s32 %v265, 1
        %vm284 = vcmp.ge.s32.totalorder %v282, 0
        %vm285 = vcmp.ge.s32.totalorder %v283, 0
        %vm286 = vcmp.lt.s32.totalorder %v282, 16
        %vm287 = vcmp.lt.s32.totalorder %v283, 16
        %vm288 = vmand %vm284, %vm286
        %vm289 = vmand %vm285, %vm287
        %v290 = vadd.s32 %v264, 2
        %v291 = vadd.s32 %v265, 2
        %vm292 = vcmp.ge.s32.totalorder %v290, 0
        %vm293 = vcmp.ge.s32.totalorder %v291, 0
        %vm294 = vcmp.lt.s32.totalorder %v290, 16
        %vm295 = vcmp.lt.s32.totalorder %v291, 16
        %vm296 = vmand %vm292, %vm294
        %vm297 = vmand %vm293, %vm295
        %v298 = vld [vmem:[#allocation7] sm:$0x1]
        %v299 = vpack.c.bf16 %v236, %v235
        %v300 = vpack.c.bf16 %v238, %v237
        %v301 = vpack.c.bf16 %v240, %v239
        %v302 = vpack.c.bf16 %v242, %v241
        %v303 = vpack.c.bf16 %v244, %v243
        %v304 = vpack.c.bf16 %v246, %v245
        %v305 = vpack.c.bf16 %v248, %v247
        %v306 = vpack.c.bf16 %v250, %v249
        %v307 = vpack.c.bf16 %v252, %v251
        %v308 = vpack.c.bf16 %v254, %v253
        %v309 = vpack.c.bf16 %v256, %v255
        %v310 = vpack.c.bf16 %v258, %v257
        %v311 = vpack.c.bf16 %v260, %v259
        %v312 = vpack.c.bf16 %v262, %v261
        %v313 = vld [vmem:[#allocation5] sm:$0xff]
        %v314 = vld [vmem:[#allocation5 + $0x8] sm:$0xf]
        %v315 = vld [vmem:[#allocation5 + $0xc] sm:$0xff]
        %v316 = vld [vmem:[#allocation5 + $0x14] sm:$0xf]
        %v317 = vld [vmem:[#allocation5 + $0x18] sm:$0xff]
        %v318 = vld [vmem:[#allocation5 + $0x20] sm:$0xf]
        %v319 = vld [vmem:[#allocation5 + $0x24] sm:$0xff]
        %v320 = vld [vmem:[#allocation5 + $0x2c] sm:$0xf]
        %v321 = vld [vmem:[#allocation5 + $0x30] sm:$0xff]
        %v322 = vld [vmem:[#allocation5 + $0x38] sm:$0xf]
        %v323 = vld [vmem:[#allocation5 + $0x3c] sm:$0xff]
        %v324 = vld [vmem:[#allocation5 + $0x44] sm:$0xf]
        %v325 = vld [vmem:[#allocation5 + $0x48] sm:$0xff]
        %v326 = vld [vmem:[#allocation5 + $0x50] sm:$0xf]
        %v327 = vld [vmem:[#allocation5 + $0x54] sm:$0xff]
        %v328 = vld [vmem:[#allocation5 + $0x5c] sm:$0xf]
        %v329 = vld [vmem:[#allocation5 + $0x60] sm:$0xff]
        %v330 = vld [vmem:[#allocation5 + $0x68] sm:$0xf]
        %v331 = vld [vmem:[#allocation5 + $0x6c] sm:$0xff]
        %v332 = vld [vmem:[#allocation5 + $0x74] sm:$0xf]
        %v333 = vld [vmem:[#allocation5 + $0x78] sm:$0xff]
        %v334 = vld [vmem:[#allocation5 + $0x80] sm:$0xf]
        %v335 = vld [vmem:[#allocation5 + $0x84] sm:$0xff]
        %v336 = vld [vmem:[#allocation5 + $0x8c] sm:$0xf]
        %v337 = vld [vmem:[#allocation5 + $0x90] sm:$0xff]
        %v338 = vld [vmem:[#allocation5 + $0x98] sm:$0xf]
        %v339 = vld [vmem:[#allocation5 + $0x9c] sm:$0xff]
        %v340 = vld [vmem:[#allocation5 + $0xa4] sm:$0xf]
        %v341 = vld [vmem:[#allocation5 + $0xa8] sm:$0xff]
        %v342 = vld [vmem:[#allocation5 + $0xb0] sm:$0xf]
        %v343 = vld [vmem:[#allocation5 + $0xb4] sm:$0xff]
        %v344 = vld [vmem:[#allocation5 + $0xbc] sm:$0xf]
        %v377 = vunpack.c.l.b16 %v313
        %v378 = vunpack.c.h.b16 %v313
        %v379 = vunpack.c.l.b16 %v314
        %v380 = vunpack.c.l.b16 %v315
        %v381 = vunpack.c.h.b16 %v315
        %v382 = vunpack.c.l.b16 %v316
        %v383 = vunpack.c.l.b16 %v317
        %v384 = vunpack.c.h.b16 %v317
        %v385 = vunpack.c.l.b16 %v318
        %v386 = vunpack.c.l.b16 %v319
        %v387 = vunpack.c.h.b16 %v319
        %v388 = vunpack.c.l.b16 %v320
        %v389 = vunpack.c.l.b16 %v321
        %v390 = vunpack.c.h.b16 %v321
        %v391 = vunpack.c.l.b16 %v322
        %v392 = vunpack.c.l.b16 %v323
        %v393 = vunpack.c.h.b16 %v323
        %v394 = vunpack.c.l.b16 %v324
        %v395 = vunpack.c.l.b16 %v325
        %v396 = vunpack.c.h.b16 %v325
        %v397 = vunpack.c.l.b16 %v326
        %v398 = vunpack.c.l.b16 %v327
        %v399 = vunpack.c.h.b16 %v327
        %v400 = vunpack.c.l.b16 %v328
        %v401 = vunpack.c.l.b16 %v329
        %v402 = vunpack.c.h.b16 %v329
        %v403 = vunpack.c.l.b16 %v330
        %v404 = vunpack.c.l.b16 %v331
        %v405 = vunpack.c.h.b16 %v331
        %v406 = vunpack.c.l.b16 %v332
        %v407 = vunpack.c.l.b16 %v333
        %v408 = vunpack.c.h.b16 %v333
        %v409 = vunpack.c.l.b16 %v334
        %v410 = vunpack.c.l.b16 %v335
        %v411 = vunpack.c.h.b16 %v335
        %v412 = vunpack.c.l.b16 %v336
        %v413 = vunpack.c.l.b16 %v337
        %v414 = vunpack.c.h.b16 %v337
        %v415 = vunpack.c.l.b16 %v338
        %v416 = vunpack.c.l.b16 %v339
        %v417 = vunpack.c.h.b16 %v339
        %v418 = vunpack.c.l.b16 %v340
        %v419 = vunpack.c.l.b16 %v341
        %v420 = vunpack.c.h.b16 %v341
        %v421 = vunpack.c.l.b16 %v342
        %v422 = vunpack.c.l.b16 %v343
        %v423 = vunpack.c.h.b16 %v343
        %v424 = vunpack.c.l.b16 %v344
        %v425 = vpack.c.b16 %v380, %v377
        %v426 = vpack.c.b16 %v381, %v378
        %v427 = vpack.c.b16 %v382, %v379
        %v428 = vpack.c.b16 %v386, %v383
        %v429 = vpack.c.b16 %v387, %v384
        %v430 = vpack.c.b16 %v388, %v385
        %v431 = vpack.c.b16 %v392, %v389
        %v432 = vpack.c.b16 %v393, %v390
        %v433 = vpack.c.b16 %v394, %v391
        %v434 = vpack.c.b16 %v398, %v395
        %v435 = vpack.c.b16 %v399, %v396
        %v436 = vpack.c.b16 %v400, %v397
        %v437 = vpack.c.b16 %v404, %v401
        %v438 = vpack.c.b16 %v405, %v402
        %v439 = vpack.c.b16 %v406, %v403
        %v440 = vpack.c.b16 %v410, %v407
        %v441 = vpack.c.b16 %v411, %v408
        %v442 = vpack.c.b16 %v412, %v409
        %v443 = vpack.c.b16 %v416, %v413
        %v444 = vpack.c.b16 %v417, %v414
        %v445 = vpack.c.b16 %v418, %v415
        %v446 = vpack.c.b16 %v422, %v419
        %v447 = vpack.c.b16 %v423, %v420
        %v448 = vpack.c.b16 %v424, %v421
        %473 = vmatprep.subr.bf16.mxu0 %v447
        %474 = vmatpush1.bf16.msra.mxu0 %v446
        %475 = vmatprep.subr.bf16.mxu0 %v444
        %476 = vmatpush1.bf16.msra.mxu0 %v443
        %477 = vmatprep.subr.bf16.mxu0 %v441
        %478 = vmatpush1.bf16.msra.mxu0 %v440
        %479 = vmatprep.subr.bf16.mxu0 %v438
        %480 = vmatpush1.bf16.msra.mxu0 %v437
        %481 = vmatprep.subr.bf16.mxu0 %v435
        %482 = vmatpush1.bf16.msra.mxu0 %v434
        %483 = vmatprep.subr.bf16.mxu0 %v432
        %484 = vmatpush1.bf16.msra.mxu0 %v431
        %485 = vmatprep.subr.bf16.mxu0 %v429
        %486 = vmatpush1.bf16.msra.mxu0 %v428
        %487 = vmatprep.subr.bf16.mxu0 %v426
        %488 = vmatpush1.bf16.msra.mxu0 %v425
        %489 = vmatprep.subr.bf16.mxu0 0
        %490 = vmatpush2.bf16.msra.mxu0 0
        %491 = vmatprep.subr.bf16.mxu0 0
        %492 = vmatpush2.bf16.msra.mxu0 0
        %493 = vmatprep.subr.bf16.mxu0 0
        %494 = vmatpush2.bf16.msra.mxu0 0
        %495 = vmatprep.subr.bf16.mxu0 0
        %496 = vmatpush2.bf16.msra.mxu0 0
        %497 = vmatprep.subr.bf16.mxu0 0
        %498 = vmatpush2.bf16.msra.mxu0 0
        %499 = vmatprep.subr.bf16.mxu0 0
        %500 = vmatpush2.bf16.msra.mxu0 0
        %501 = vmatprep.subr.bf16.mxu0 0
        %502 = vmatpush2.bf16.msra.mxu0 0
        %503 = vmatprep.subr.bf16.mxu0 0
        %504 = vmatpush2.bf16.msra.mxu0 0
        %505 = vmatprep.mubr.bf16.mxu0 0
        %506 = vmatmul.mubr.bf16.gmra.mxu0 %v299
        %v507 = vpop.f32.mrf.mxu0
        %v508 = vadd.f32 0.0, %v507
        %v509 = vpop.f32.mrf.mxu0
        %v510 = vpop.f32.mrf.mxu0
        %v511 = vadd.f32 0.0, %v510
        %v512 = vpop.f32.mrf.mxu0
        %513 = vmatprep.mubr.bf16.mxu0 0
        %514 = vmatmul.mubr.bf16.gmra.mxu0 %v300
        %v515 = vpop.f32.mrf.mxu0
        %v516 = vadd.f32 0.0, %v515
        %v517 = vpop.f32.mrf.mxu0
        %v518 = vadd.f32 0.0, %v517
        %v519 = vpop.f32.mrf.mxu0
        %v520 = vadd.f32 0.0, %v519
        %v521 = vpop.f32.mrf.mxu0
        %v522 = vadd.f32 0.0, %v521
        %523 = vmatprep.mubr.bf16.mxu0 0
        %524 = vmatmul.mubr.bf16.gmra.mxu0 %v301
        %v525 = vpop.f32.mrf.mxu0
        %v526 = vadd.f32 0.0, %v525
        %v527 = vpop.f32.mrf.mxu0
        %v528 = vadd.f32 0.0, %v527
        %v529 = vpop.f32.mrf.mxu0
        %v530 = vadd.f32 0.0, %v529
        %v531 = vpop.f32.mrf.mxu0
        %v532 = vadd.f32 0.0, %v531
        %533 = vmatprep.mubr.bf16.mxu0 0
        %534 = vmatmul.mubr.bf16.gmra.mxu0 %v302
        %v535 = vpop.f32.mrf.mxu0
        %v536 = vadd.f32 0.0, %v535
        %v537 = vpop.f32.mrf.mxu0
        %v538 = vadd.f32 0.0, %v537
        %v539 = vpop.f32.mrf.mxu0
        %v540 = vadd.f32 0.0, %v539
        %v541 = vpop.f32.mrf.mxu0
        %v542 = vadd.f32 0.0, %v541
        %543 = vmatprep.mubr.bf16.mxu0 0
        %544 = vmatmul.mubr.bf16.gmra.mxu0 %v303
        %v545 = vpop.f32.mrf.mxu0
        %v546 = vadd.f32 0.0, %v545
        %v547 = vpop.f32.mrf.mxu0
        %v548 = vadd.f32 0.0, %v547
        %v549 = vpop.f32.mrf.mxu0
        %v550 = vadd.f32 0.0, %v549
        %v551 = vpop.f32.mrf.mxu0
        %v552 = vadd.f32 0.0, %v551
        %553 = vmatprep.mubr.bf16.mxu0 0
        %554 = vmatmul.mubr.bf16.gmra.mxu0 %v304
        %v555 = vpop.f32.mrf.mxu0
        %v556 = vadd.f32 0.0, %v555
        %v557 = vpop.f32.mrf.mxu0
        %v558 = vadd.f32 0.0, %v557
        %v559 = vpop.f32.mrf.mxu0
        %v560 = vadd.f32 0.0, %v559
        %v561 = vpop.f32.mrf.mxu0
        %v562 = vadd.f32 0.0, %v561
        %563 = vmatprep.mubr.bf16.mxu0 0
        %564 = vmatmul.mubr.bf16.gmra.mxu0 %v305
        %v565 = vpop.f32.mrf.mxu0
        %v566 = vadd.f32 0.0, %v565
        %v567 = vpop.f32.mrf.mxu0
        %v568 = vadd.f32 0.0, %v567
        %v569 = vpop.f32.mrf.mxu0
        %v570 = vadd.f32 0.0, %v569
        %v571 = vpop.f32.mrf.mxu0
        %v572 = vadd.f32 0.0, %v571
        %573 = vmatprep.mubr.bf16.mxu0 0
        %574 = vmatmul.mubr.bf16.gmra.mxu0 %v306
        %v575 = vpop.f32.mrf.mxu0
        %v576 = vadd.f32 0.0, %v575
        %v577 = vpop.f32.mrf.mxu0
        %v578 = vadd.f32 0.0, %v577
        %v579 = vpop.f32.mrf.mxu0
        %v580 = vadd.f32 0.0, %v579
        %v581 = vpop.f32.mrf.mxu0
        %v582 = vadd.f32 0.0, %v581
        %583 = vmatprep.mubr.bf16.mxu0 0
        %584 = vmatmul.mubr.bf16.gmra.mxu0 %v307
        %v585 = vpop.f32.mrf.mxu0
        %v586 = vadd.f32 0.0, %v585
        %v587 = vpop.f32.mrf.mxu0
        %v588 = vadd.f32 0.0, %v587
        %v589 = vpop.f32.mrf.mxu0
        %v590 = vadd.f32 0.0, %v589
        %v591 = vpop.f32.mrf.mxu0
        %v592 = vadd.f32 0.0, %v591
        %593 = vmatprep.mubr.bf16.mxu0 0
        %594 = vmatmul.mubr.bf16.gmra.mxu0 %v308
        %v595 = vpop.f32.mrf.mxu0
        %v596 = vadd.f32 0.0, %v595
        %v597 = vpop.f32.mrf.mxu0
        %v598 = vadd.f32 0.0, %v597
        %v599 = vpop.f32.mrf.mxu0
        %v600 = vadd.f32 0.0, %v599
        %v601 = vpop.f32.mrf.mxu0
        %v602 = vadd.f32 0.0, %v601
        %603 = vmatprep.mubr.bf16.mxu0 0
        %604 = vmatmul.mubr.bf16.gmra.mxu0 %v309
        %v605 = vpop.f32.mrf.mxu0
        %v606 = vadd.f32 0.0, %v605
        %v607 = vpop.f32.mrf.mxu0
        %v608 = vadd.f32 0.0, %v607
        %v609 = vpop.f32.mrf.mxu0
        %v610 = vadd.f32 0.0, %v609
        %v611 = vpop.f32.mrf.mxu0
        %v612 = vadd.f32 0.0, %v611
        %613 = vmatprep.mubr.bf16.mxu0 0
        %614 = vmatmul.mubr.bf16.gmra.mxu0 %v310
        %v615 = vpop.f32.mrf.mxu0
        %v616 = vadd.f32 0.0, %v615
        %v617 = vpop.f32.mrf.mxu0
        %v618 = vadd.f32 0.0, %v617
        %v619 = vpop.f32.mrf.mxu0
        %v620 = vadd.f32 0.0, %v619
        %v621 = vpop.f32.mrf.mxu0
        %v622 = vadd.f32 0.0, %v621
        %623 = vmatprep.mubr.bf16.mxu0 0
        %624 = vmatmul.mubr.bf16.gmra.mxu0 %v311
        %v625 = vpop.f32.mrf.mxu0
        %v626 = vpop.f32.mrf.mxu0
        %v627 = vadd.f32 0.0, %v626
        %v628 = vpop.f32.mrf.mxu0
        %v629 = vpop.f32.mrf.mxu0
        %v630 = vadd.f32 0.0, %v629
        %631 = vmatprep.mubr.bf16.mxu0 0
        %632 = vmatmul.mubr.bf16.gmra.mxu0 %v312
        %v633 = vpop.f32.mrf.mxu0
        %v634 = vpop.f32.mrf.mxu0
        %v635 = vpop.f32.mrf.mxu0
        %v636 = vpop.f32.mrf.mxu0
        %637 = vdwg.mxu0
        %638 = vmatprep.subr.bf16.mxu0 0
        %639 = vmatpush1.bf16.msra.mxu0 %v448
        %640 = vmatprep.subr.bf16.mxu0 0
        %641 = vmatpush1.bf16.msra.mxu0 %v445
        %642 = vmatprep.subr.bf16.mxu0 0
        %643 = vmatpush1.bf16.msra.mxu0 %v442
        %644 = vmatprep.subr.bf16.mxu0 0
        %645 = vmatpush1.bf16.msra.mxu0 %v439
        %646 = vmatprep.subr.bf16.mxu0 0
        %647 = vmatpush1.bf16.msra.mxu0 %v436
        %648 = vmatprep.subr.bf16.mxu0 0
        %649 = vmatpush1.bf16.msra.mxu0 %v433
        %650 = vmatprep.subr.bf16.mxu0 0
        %651 = vmatpush1.bf16.msra.mxu0 %v430
        %652 = vmatprep.subr.bf16.mxu0 0
        %653 = vmatpush1.bf16.msra.mxu0 %v427
        %654 = vmatprep.subr.bf16.mxu0 0
        %655 = vmatpush2.bf16.msra.mxu0 0
        %656 = vmatprep.subr.bf16.mxu0 0
        %657 = vmatpush2.bf16.msra.mxu0 0
        %658 = vmatprep.subr.bf16.mxu0 0
        %659 = vmatpush2.bf16.msra.mxu0 0
        %660 = vmatprep.subr.bf16.mxu0 0
        %661 = vmatpush2.bf16.msra.mxu0 0
        %662 = vmatprep.subr.bf16.mxu0 0
        %663 = vmatpush2.bf16.msra.mxu0 0
        %664 = vmatprep.subr.bf16.mxu0 0
        %665 = vmatpush2.bf16.msra.mxu0 0
        %666 = vmatprep.subr.bf16.mxu0 0
        %667 = vmatpush2.bf16.msra.mxu0 0
        %668 = vmatprep.subr.bf16.mxu0 0
        %669 = vmatpush2.bf16.msra.mxu0 0
        %670 = vmatprep.mubr.bf16.mxu0 0
        %671 = vmatmul.mubr.bf16.gmra.mxu0 %v299
        %v672 = vpop.f32.mrf.mxu0
        %v673 = vpop.f32.mrf.mxu0
        %v674 = vpop.f32.mrf.mxu0
        %v675 = vpop.f32.mrf.mxu0
        %676 = vmatprep.mubr.bf16.mxu0 0
        %677 = vmatmul.mubr.bf16.gmra.mxu0 %v300
        %v678 = vpop.f32.mrf.mxu0
        %v679 = vpop.f32.mrf.mxu0
        %v680 = vpop.f32.mrf.mxu0
        %v681 = vpop.f32.mrf.mxu0
        %682 = vmatprep.mubr.bf16.mxu0 0
        %683 = vmatmul.mubr.bf16.gmra.mxu0 %v301
        %v684 = vpop.f32.mrf.mxu0
        %v685 = vadd.f32 0.0, %v684
        %v686 = vpop.f32.mrf.mxu0
        %v687 = vpop.f32.mrf.mxu0
        %v688 = vadd.f32 0.0, %v687
        %v689 = vpop.f32.mrf.mxu0
        %690 = vmatprep.mubr.bf16.mxu0 0
        %691 = vmatmul.mubr.bf16.gmra.mxu0 %v302
        %v692 = vpop.f32.mrf.mxu0
        %v693 = vadd.f32 0.0, %v692
        %v694 = vpop.f32.mrf.mxu0
        %v695 = vpop.f32.mrf.mxu0
        %v696 = vadd.f32 0.0, %v695
        %v697 = vpop.f32.mrf.mxu0
        %698 = vmatprep.mubr.bf16.mxu0 0
        %699 = vmatmul.mubr.bf16.gmra.mxu0 %v303
        %v700 = vpop.f32.mrf.mxu0
        %v701 = vadd.f32 0.0, %v700
        %v702 = vpop.f32.mrf.mxu0
        %v703 = vpop.f32.mrf.mxu0
        %v704 = vadd.f32 0.0, %v703
        %v705 = vpop.f32.mrf.mxu0
        %706 = vmatprep.mubr.bf16.mxu0 0
        %707 = vmatmul.mubr.bf16.gmra.mxu0 %v304
        %v708 = vpop.f32.mrf.mxu0
        %v709 = vadd.f32 0.0, %v708
        %v710 = vpop.f32.mrf.mxu0
        %v711 = vpop.f32.mrf.mxu0
        %v712 = vadd.f32 0.0, %v711
        %v713 = vpop.f32.mrf.mxu0
        %714 = vmatprep.mubr.bf16.mxu0 0
        %715 = vmatmul.mubr.bf16.gmra.mxu0 %v305
        %v716 = vpop.f32.mrf.mxu0
        %v717 = vadd.f32 0.0, %v716
        %v718 = vpop.f32.mrf.mxu0
        %v719 = vpop.f32.mrf.mxu0
        %v720 = vadd.f32 0.0, %v719
        %v721 = vpop.f32.mrf.mxu0
        %722 = vmatprep.mubr.bf16.mxu0 0
        %723 = vmatmul.mubr.bf16.gmra.mxu0 %v306
        %v724 = vpop.f32.mrf.mxu0
        %v725 = vadd.f32 0.0, %v724
        %v726 = vpop.f32.mrf.mxu0
        %v727 = vpop.f32.mrf.mxu0
        %v728 = vadd.f32 0.0, %v727
        %v729 = vpop.f32.mrf.mxu0
        %730 = vmatprep.mubr.bf16.mxu0 0
        %731 = vmatmul.mubr.bf16.gmra.mxu0 %v307
        %v732 = vpop.f32.mrf.mxu0
        %v733 = vadd.f32 0.0, %v732
        %v734 = vpop.f32.mrf.mxu0
        %v735 = vpop.f32.mrf.mxu0
        %v736 = vadd.f32 0.0, %v735
        %v737 = vpop.f32.mrf.mxu0
        %738 = vmatprep.mubr.bf16.mxu0 0
        %739 = vmatmul.mubr.bf16.gmra.mxu0 %v308
        %v740 = vpop.f32.mrf.mxu0
        %v741 = vadd.f32 0.0, %v740
        %v742 = vpop.f32.mrf.mxu0
        %v743 = vpop.f32.mrf.mxu0
        %v744 = vadd.f32 0.0, %v743
        %v745 = vpop.f32.mrf.mxu0
        %746 = vmatprep.mubr.bf16.mxu0 0
        %747 = vmatmul.mubr.bf16.gmra.mxu0 %v309
        %v748 = vpop.f32.mrf.mxu0
        %v749 = vadd.f32 0.0, %v748
        %v750 = vpop.f32.mrf.mxu0
        %v751 = vpop.f32.mrf.mxu0
        %v752 = vadd.f32 0.0, %v751
        %v753 = vpop.f32.mrf.mxu0
        %754 = vmatprep.mubr.bf16.mxu0 0
        %755 = vmatmul.mubr.bf16.gmra.mxu0 %v310
        %v756 = vpop.f32.mrf.mxu0
        %v757 = vadd.f32 0.0, %v756
        %v758 = vpop.f32.mrf.mxu0
        %v759 = vpop.f32.mrf.mxu0
        %v760 = vadd.f32 0.0, %v759
        %v761 = vpop.f32.mrf.mxu0
        %762 = vmatprep.mubr.bf16.mxu0 0
        %763 = vmatmul.mubr.bf16.gmra.mxu0 %v311
        %v764 = vpop.f32.mrf.mxu0
        %v765 = vadd.f32 0.0, %v764
        %v766 = vpop.f32.mrf.mxu0
        %v767 = vpop.f32.mrf.mxu0
        %v768 = vadd.f32 0.0, %v767
        %v769 = vpop.f32.mrf.mxu0
        %770 = vmatprep.mubr.bf16.mxu0 0
        %771 = vmatmul.mubr.bf16.gmra.mxu0 %v312
        %v772 = vpop.f32.mrf.mxu0
        %v773 = vadd.f32 0.0, %v772
        %v774 = vpop.f32.mrf.mxu0
        %v775 = vpop.f32.mrf.mxu0
        %v776 = vadd.f32 0.0, %v775
        %v777 = vpop.f32.mrf.mxu0
        %778 = vdwg.mxu0
        %v779 = vlaneseq
        %v780 = vshrl.u32 %v779, 7
        %v781 = vsub.s32 0, %v780
        %v782 = vrot.slane %v298, %v781
        %v783 = vadd.f32 %v782, %v518
        %v784 = vadd.f32 %v782, %v522
        %v785 = vadd.f32 %v782, %v528
        %v786 = vadd.f32 %v782, %v532
        %v787 = vadd.f32 %v782, %v538
        %v788 = vadd.f32 %v782, %v542
        %v789 = vadd.f32 %v782, %v548
        %v790 = vadd.f32 %v782, %v552
        %v791 = vadd.f32 %v782, %v558
        %v792 = vadd.f32 %v782, %v562
        %v793 = vadd.f32 %v782, %v568
        %v794 = vadd.f32 %v782, %v572
        %v795 = vadd.f32 %v782, %v578
        %v796 = vadd.f32 %v782, %v582
        %v797 = vadd.f32 %v782, %v588
        %v798 = vadd.f32 %v782, %v592
        %v799 = vadd.f32 %v782, %v598
        %v800 = vadd.f32 %v782, %v602
        %v801 = vadd.f32 %v782, %v608
        %v802 = vadd.f32 %v782, %v612
        %v803 = vadd.f32 %v782, %v618
        %v804 = vadd.f32 %v782, %v622
        %v805 = vadd.f32 %v782, %v627
        %v806 = vadd.f32 %v782, %v630
        %v807 = vadd.f32 %v783, %v508
        %v808 = vadd.f32 %v784, %v511
        %v809 = vadd.f32 %v785, %v516
        %v810 = vadd.f32 %v786, %v520
        %v811 = vadd.f32 %v787, %v526
        %v812 = vadd.f32 %v788, %v530
        %v813 = vadd.f32 %v789, %v536
        %v814 = vadd.f32 %v790, %v540
        %v815 = vadd.f32 %v791, %v546
        %v816 = vadd.f32 %v792, %v550
        %v817 = vadd.f32 %v793, %v556
        %v818 = vadd.f32 %v794, %v560
        %v819 = vadd.f32 %v795, %v566
        %v820 = vadd.f32 %v796, %v570
        %v821 = vadd.f32 %v797, %v576
        %v822 = vadd.f32 %v798, %v580
        %v823 = vadd.f32 %v799, %v586
        %v824 = vadd.f32 %v800, %v590
        %v825 = vadd.f32 %v801, %v596
        %v826 = vadd.f32 %v802, %v600
        %v827 = vadd.f32 %v803, %v606
        %v828 = vadd.f32 %v804, %v610
        %v829 = vadd.f32 %v805, %v616
        %v830 = vadd.f32 %v806, %v620
        %v831 = vadd.f32 %v807, %v685
        %v832 = vadd.f32 %v808, %v688
        %v833 = vadd.f32 %v809, %v693
        %v834 = vadd.f32 %v810, %v696
        %v835 = vadd.f32 %v811, %v701
        %v836 = vadd.f32 %v812, %v704
        %v837 = vadd.f32 %v813, %v709
        %v838 = vadd.f32 %v814, %v712
        %v839 = vadd.f32 %v815, %v717
        %v840 = vadd.f32 %v816, %v720
        %v841 = vadd.f32 %v817, %v725
        %v842 = vadd.f32 %v818, %v728
        %v843 = vadd.f32 %v819, %v733
        %v844 = vadd.f32 %v820, %v736
        %v845 = vadd.f32 %v821, %v741
        %v846 = vadd.f32 %v822, %v744
        %v847 = vadd.f32 %v823, %v749
        %v848 = vadd.f32 %v824, %v752
        %v849 = vadd.f32 %v825, %v757
        %v850 = vadd.f32 %v826, %v760
        %v851 = vadd.f32 %v827, %v765
        %v852 = vadd.f32 %v828, %v768
        %v853 = vadd.f32 %v829, %v773
        %v854 = vadd.f32 %v830, %v776
        %v855 = vmax.f32 %v831, 0.0
        %v856 = vmax.f32 %v832, 0.0
        %v857 = vmax.f32 %v833, 0.0
        %v858 = vmax.f32 %v834, 0.0
        %v859 = vmax.f32 %v835, 0.0
        %v860 = vmax.f32 %v836, 0.0
        %v861 = vmax.f32 %v837, 0.0
        %v862 = vmax.f32 %v838, 0.0
        %v863 = vmax.f32 %v839, 0.0
        %v864 = vmax.f32 %v840, 0.0
        %v865 = vmax.f32 %v841, 0.0
        %v866 = vmax.f32 %v842, 0.0
        %v867 = vmax.f32 %v843, 0.0
        %v868 = vmax.f32 %v844, 0.0
        %v869 = vmax.f32 %v845, 0.0
        %v870 = vmax.f32 %v846, 0.0
        %v871 = vmax.f32 %v847, 0.0
        %v872 = vmax.f32 %v848, 0.0
        %v873 = vmax.f32 %v849, 0.0
        %v874 = vmax.f32 %v850, 0.0
        %v875 = vmax.f32 %v851, 0.0
        %v876 = vmax.f32 %v852, 0.0
        %v877 = vmax.f32 %v853, 0.0
        %v878 = vmax.f32 %v854, 0.0
        %v879 = vpack.c.bf16 %v856, %v855
        %v880 = vpack.c.bf16 %v858, %v857
        %v881 = vpack.c.bf16 %v860, %v859
        %v882 = vpack.c.bf16 %v862, %v861
        %v883 = vpack.c.bf16 %v864, %v863
        %v884 = vpack.c.bf16 %v866, %v865
        %v885 = vpack.c.bf16 %v868, %v867
        %v886 = vpack.c.bf16 %v870, %v869
        %v887 = vpack.c.bf16 %v872, %v871
        %v888 = vpack.c.bf16 %v874, %v873
        %v889 = vpack.c.bf16 %v876, %v875
        %v890 = vpack.c.bf16 %v878, %v877
        %s891 = scalar_lea.vmem [#allocation5], 192
        %v892 = vld [vmem:[%s891] sm:$0xff]
        %v893 = vld [vmem:[%s891 + $0x8] sm:$0xf]
        %v894 = vld [vmem:[%s891 + $0xc] sm:$0xff]
        %v895 = vld [vmem:[%s891 + $0x14] sm:$0xf]
        %v896 = vld [vmem:[%s891 + $0x18] sm:$0xff]
        %v897 = vld [vmem:[%s891 + $0x20] sm:$0xf]
        %v898 = vld [vmem:[%s891 + $0x24] sm:$0xff]
        %v899 = vld [vmem:[%s891 + $0x2c] sm:$0xf]
        %v900 = vld [vmem:[%s891 + $0x30] sm:$0xff]
        %v901 = vld [vmem:[%s891 + $0x38] sm:$0xf]
        %v902 = vld [vmem:[%s891 + $0x3c] sm:$0xff]
        %v903 = vld [vmem:[%s891 + $0x44] sm:$0xf]
        %v904 = vld [vmem:[%s891 + $0x48] sm:$0xff]
        %v905 = vld [vmem:[%s891 + $0x50] sm:$0xf]
        %v906 = vld [vmem:[%s891 + $0x54] sm:$0xff]
        %v907 = vld [vmem:[%s891 + $0x5c] sm:$0xf]
        %v908 = vld [vmem:[%s891 + $0x60] sm:$0xff]
        %v909 = vld [vmem:[%s891 + $0x68] sm:$0xf]
        %v910 = vld [vmem:[%s891 + $0x6c] sm:$0xff]
        %v911 = vld [vmem:[%s891 + $0x74] sm:$0xf]
        %v912 = vld [vmem:[%s891 + $0x78] sm:$0xff]
        %v913 = vld [vmem:[%s891 + $0x80] sm:$0xf]
        %v914 = vld [vmem:[%s891 + $0x84] sm:$0xff]
        %v915 = vld [vmem:[%s891 + $0x8c] sm:$0xf]
        %v916 = vld [vmem:[%s891 + $0x90] sm:$0xff]
        %v917 = vld [vmem:[%s891 + $0x98] sm:$0xf]
        %v918 = vld [vmem:[%s891 + $0x9c] sm:$0xff]
        %v919 = vld [vmem:[%s891 + $0xa4] sm:$0xf]
        %v920 = vld [vmem:[%s891 + $0xa8] sm:$0xff]
        %v921 = vld [vmem:[%s891 + $0xb0] sm:$0xf]
        %v922 = vld [vmem:[%s891 + $0xb4] sm:$0xff]
        %v923 = vld [vmem:[%s891 + $0xbc] sm:$0xf]
        %v956 = vunpack.c.l.b16 %v892
        %v957 = vunpack.c.h.b16 %v892
        %v958 = vunpack.c.l.b16 %v893
        %v959 = vunpack.c.l.b16 %v894
        %v960 = vunpack.c.h.b16 %v894
        %v961 = vunpack.c.l.b16 %v895
        %v962 = vunpack.c.l.b16 %v896
        %v963 = vunpack.c.h.b16 %v896
        %v964 = vunpack.c.l.b16 %v897
        %v965 = vunpack.c.l.b16 %v898
        %v966 = vunpack.c.h.b16 %v898
        %v967 = vunpack.c.l.b16 %v899
        %v968 = vunpack.c.l.b16 %v900
        %v969 = vunpack.c.h.b16 %v900
        %v970 = vunpack.c.l.b16 %v901
        %v971 = vunpack.c.l.b16 %v902
        %v972 = vunpack.c.h.b16 %v902
        %v973 = vunpack.c.l.b16 %v903
        %v974 = vunpack.c.l.b16 %v904
        %v975 = vunpack.c.h.b16 %v904
        %v976 = vunpack.c.l.b16 %v905
        %v977 = vunpack.c.l.b16 %v906
        %v978 = vunpack.c.h.b16 %v906
        %v979 = vunpack.c.l.b16 %v907
        %v980 = vunpack.c.l.b16 %v908
        %v981 = vunpack.c.h.b16 %v908
        %v982 = vunpack.c.l.b16 %v909
        %v983 = vunpack.c.l.b16 %v910
        %v984 = vunpack.c.h.b16 %v910
        %v985 = vunpack.c.l.b16 %v911
        %v986 = vunpack.c.l.b16 %v912
        %v987 = vunpack.c.h.b16 %v912
        %v988 = vunpack.c.l.b16 %v913
        %v989 = vunpack.c.l.b16 %v914
        %v990 = vunpack.c.h.b16 %v914
        %v991 = vunpack.c.l.b16 %v915
        %v992 = vunpack.c.l.b16 %v916
        %v993 = vunpack.c.h.b16 %v916
        %v994 = vunpack.c.l.b16 %v917
        %v995 = vunpack.c.l.b16 %v918
        %v996 = vunpack.c.h.b16 %v918
        %v997 = vunpack.c.l.b16 %v919
        %v998 = vunpack.c.l.b16 %v920
        %v999 = vunpack.c.h.b16 %v920
        %v1000 = vunpack.c.l.b16 %v921
        %v1001 = vunpack.c.l.b16 %v922
        %v1002 = vunpack.c.h.b16 %v922
        %v1003 = vunpack.c.l.b16 %v923
        %v1004 = vpack.c.b16 %v959, %v956
        %v1005 = vpack.c.b16 %v960, %v957
        %v1006 = vpack.c.b16 %v961, %v958
        %v1007 = vpack.c.b16 %v965, %v962
        %v1008 = vpack.c.b16 %v966, %v963
        %v1009 = vpack.c.b16 %v967, %v964
        %v1010 = vpack.c.b16 %v971, %v968
        %v1011 = vpack.c.b16 %v972, %v969
        %v1012 = vpack.c.b16 %v973, %v970
        %v1013 = vpack.c.b16 %v977, %v974
        %v1014 = vpack.c.b16 %v978, %v975
        %v1015 = vpack.c.b16 %v979, %v976
        %v1016 = vpack.c.b16 %v983, %v980
        %v1017 = vpack.c.b16 %v984, %v981
        %v1018 = vpack.c.b16 %v985, %v982
        %v1019 = vpack.c.b16 %v989, %v986
        %v1020 = vpack.c.b16 %v990, %v987
        %v1021 = vpack.c.b16 %v991, %v988
        %v1022 = vpack.c.b16 %v995, %v992
        %v1023 = vpack.c.b16 %v996, %v993
        %v1024 = vpack.c.b16 %v997, %v994
        %v1025 = vpack.c.b16 %v1001, %v998
        %v1026 = vpack.c.b16 %v1002, %v999
        %v1027 = vpack.c.b16 %v1003, %v1000
        %1052 = vmatprep.subr.bf16.mxu0 %v1026
        %1053 = vmatpush1.bf16.msra.mxu0 %v1025
        %1054 = vmatprep.subr.bf16.mxu0 %v1023
        %1055 = vmatpush1.bf16.msra.mxu0 %v1022
        %1056 = vmatprep.subr.bf16.mxu0 %v1020
        %1057 = vmatpush1.bf16.msra.mxu0 %v1019
        %1058 = vmatprep.subr.bf16.mxu0 %v1017
        %1059 = vmatpush1.bf16.msra.mxu0 %v1016
        %1060 = vmatprep.subr.bf16.mxu0 %v1014
        %1061 = vmatpush1.bf16.msra.mxu0 %v1013
        %1062 = vmatprep.subr.bf16.mxu0 %v1011
        %1063 = vmatpush1.bf16.msra.mxu0 %v1010
        %1064 = vmatprep.subr.bf16.mxu0 %v1008
        %1065 = vmatpush1.bf16.msra.mxu0 %v1007
        %1066 = vmatprep.subr.bf16.mxu0 %v1005
        %1067 = vmatpush1.bf16.msra.mxu0 %v1004
        %1068 = vmatprep.subr.bf16.mxu0 0
        %1069 = vmatpush2.bf16.msra.mxu0 0
        %1070 = vmatprep.subr.bf16.mxu0 0
        %1071 = vmatpush2.bf16.msra.mxu0 0
        %1072 = vmatprep.subr.bf16.mxu0 0
        %1073 = vmatpush2.bf16.msra.mxu0 0
        %1074 = vmatprep.subr.bf16.mxu0 0
        %1075 = vmatpush2.bf16.msra.mxu0 0
        %1076 = vmatprep.subr.bf16.mxu0 0
        %1077 = vmatpush2.bf16.msra.mxu0 0
        %1078 = vmatprep.subr.bf16.mxu0 0
        %1079 = vmatpush2.bf16.msra.mxu0 0
        %1080 = vmatprep.subr.bf16.mxu0 0
        %1081 = vmatpush2.bf16.msra.mxu0 0
        %1082 = vmatprep.subr.bf16.mxu0 0
        %1083 = vmatpush2.bf16.msra.mxu0 0
        %1084 = vmatprep.mubr.bf16.mxu0 0
        %1085 = vmatmul.mubr.bf16.gmra.mxu0 %v879
        %v1086 = vpop.f32.mrf.mxu0
        %v1087 = vadd.f32 0.0, %v1086
        %v1088 = vpop.f32.mrf.mxu0
        %v1089 = vadd.f32 0.0, %v1088
        %v1090 = vpop.f32.mrf.mxu0
        %v1091 = vadd.f32 0.0, %v1090
        %v1092 = vpop.f32.mrf.mxu0
        %v1093 = vadd.f32 0.0, %v1092
        %1094 = vmatprep.mubr.bf16.mxu0 0
        %1095 = vmatmul.mubr.bf16.gmra.mxu0 %v880
        %v1096 = vpop.f32.mrf.mxu0
        %v1097 = vadd.f32 0.0, %v1096
        %v1098 = vpop.f32.mrf.mxu0
        %v1099 = vadd.f32 0.0, %v1098
        %v1100 = vpop.f32.mrf.mxu0
        %v1101 = vadd.f32 0.0, %v1100
        %v1102 = vpop.f32.mrf.mxu0
        %v1103 = vadd.f32 0.0, %v1102
        %1104 = vmatprep.mubr.bf16.mxu0 0
        %1105 = vmatmul.mubr.bf16.gmra.mxu0 %v881
        %v1106 = vpop.f32.mrf.mxu0
        %v1107 = vadd.f32 0.0, %v1106
        %v1108 = vpop.f32.mrf.mxu0
        %v1109 = vadd.f32 0.0, %v1108
        %v1110 = vpop.f32.mrf.mxu0
        %v1111 = vadd.f32 0.0, %v1110
        %v1112 = vpop.f32.mrf.mxu0
        %v1113 = vadd.f32 0.0, %v1112
        %1114 = vmatprep.mubr.bf16.mxu0 0
        %1115 = vmatmul.mubr.bf16.gmra.mxu0 %v882
        %v1116 = vpop.f32.mrf.mxu0
        %v1117 = vadd.f32 0.0, %v1116
        %v1118 = vpop.f32.mrf.mxu0
        %v1119 = vadd.f32 0.0, %v1118
        %v1120 = vpop.f32.mrf.mxu0
        %v1121 = vadd.f32 0.0, %v1120
        %v1122 = vpop.f32.mrf.mxu0
        %v1123 = vadd.f32 0.0, %v1122
        %1124 = vmatprep.mubr.bf16.mxu0 0
        %1125 = vmatmul.mubr.bf16.gmra.mxu0 %v883
        %v1126 = vpop.f32.mrf.mxu0
        %v1127 = vadd.f32 0.0, %v1126
        %v1128 = vpop.f32.mrf.mxu0
        %v1129 = vadd.f32 0.0, %v1128
        %v1130 = vpop.f32.mrf.mxu0
        %v1131 = vadd.f32 0.0, %v1130
        %v1132 = vpop.f32.mrf.mxu0
        %v1133 = vadd.f32 0.0, %v1132
        %1134 = vmatprep.mubr.bf16.mxu0 0
        %1135 = vmatmul.mubr.bf16.gmra.mxu0 %v884
        %v1136 = vpop.f32.mrf.mxu0
        %v1137 = vadd.f32 0.0, %v1136
        %v1138 = vpop.f32.mrf.mxu0
        %v1139 = vadd.f32 0.0, %v1138
        %v1140 = vpop.f32.mrf.mxu0
        %v1141 = vadd.f32 0.0, %v1140
        %v1142 = vpop.f32.mrf.mxu0
        %v1143 = vadd.f32 0.0, %v1142
        %1144 = vmatprep.mubr.bf16.mxu0 0
        %1145 = vmatmul.mubr.bf16.gmra.mxu0 %v885
        %v1146 = vpop.f32.mrf.mxu0
        %v1147 = vadd.f32 0.0, %v1146
        %v1148 = vpop.f32.mrf.mxu0
        %v1149 = vadd.f32 0.0, %v1148
        %v1150 = vpop.f32.mrf.mxu0
        %v1151 = vadd.f32 0.0, %v1150
        %v1152 = vpop.f32.mrf.mxu0
        %v1153 = vadd.f32 0.0, %v1152
        %1154 = vmatprep.mubr.bf16.mxu0 0
        %1155 = vmatmul.mubr.bf16.gmra.mxu0 %v886
        %v1156 = vpop.f32.mrf.mxu0
        %v1157 = vadd.f32 0.0, %v1156
        %v1158 = vpop.f32.mrf.mxu0
        %v1159 = vadd.f32 0.0, %v1158
        %v1160 = vpop.f32.mrf.mxu0
        %v1161 = vadd.f32 0.0, %v1160
        %v1162 = vpop.f32.mrf.mxu0
        %v1163 = vadd.f32 0.0, %v1162
        %1164 = vmatprep.mubr.bf16.mxu0 0
        %1165 = vmatmul.mubr.bf16.gmra.mxu0 %v887
        %v1166 = vpop.f32.mrf.mxu0
        %v1167 = vadd.f32 0.0, %v1166
        %v1168 = vpop.f32.mrf.mxu0
        %v1169 = vadd.f32 0.0, %v1168
        %v1170 = vpop.f32.mrf.mxu0
        %v1171 = vadd.f32 0.0, %v1170
        %v1172 = vpop.f32.mrf.mxu0
        %v1173 = vadd.f32 0.0, %v1172
        %1174 = vmatprep.mubr.bf16.mxu0 0
        %1175 = vmatmul.mubr.bf16.gmra.mxu0 %v888
        %v1176 = vpop.f32.mrf.mxu0
        %v1177 = vadd.f32 0.0, %v1176
        %v1178 = vpop.f32.mrf.mxu0
        %v1179 = vadd.f32 0.0, %v1178
        %v1180 = vpop.f32.mrf.mxu0
        %v1181 = vadd.f32 0.0, %v1180
        %v1182 = vpop.f32.mrf.mxu0
        %v1183 = vadd.f32 0.0, %v1182
        %1184 = vmatprep.mubr.bf16.mxu0 0
        %1185 = vmatmul.mubr.bf16.gmra.mxu0 %v889
        %v1186 = vpop.f32.mrf.mxu0
        %v1187 = vadd.f32 0.0, %v1186
        %v1188 = vpop.f32.mrf.mxu0
        %v1189 = vadd.f32 0.0, %v1188
        %v1190 = vpop.f32.mrf.mxu0
        %v1191 = vadd.f32 0.0, %v1190
        %v1192 = vpop.f32.mrf.mxu0
        %v1193 = vadd.f32 0.0, %v1192
        %1194 = vmatprep.mubr.bf16.mxu0 0
        %1195 = vmatmul.mubr.bf16.gmra.mxu0 %v890
        %v1196 = vpop.f32.mrf.mxu0
        %v1197 = vadd.f32 0.0, %v1196
        %v1198 = vpop.f32.mrf.mxu0
        %v1199 = vadd.f32 0.0, %v1198
        %v1200 = vpop.f32.mrf.mxu0
        %v1201 = vadd.f32 0.0, %v1200
        %v1202 = vpop.f32.mrf.mxu0
        %v1203 = vadd.f32 0.0, %v1202
        %1204 = vdwg.mxu0
        %1205 = vmatprep.subr.bf16.mxu0 0
        %1206 = vmatpush1.bf16.msra.mxu0 %v1027
        %1207 = vmatprep.subr.bf16.mxu0 0
        %1208 = vmatpush1.bf16.msra.mxu0 %v1024
        %1209 = vmatprep.subr.bf16.mxu0 0
        %1210 = vmatpush1.bf16.msra.mxu0 %v1021
        %1211 = vmatprep.subr.bf16.mxu0 0
        %1212 = vmatpush1.bf16.msra.mxu0 %v1018
        %1213 = vmatprep.subr.bf16.mxu0 0
        %1214 = vmatpush1.bf16.msra.mxu0 %v1015
        %1215 = vmatprep.subr.bf16.mxu0 0
        %1216 = vmatpush1.bf16.msra.mxu0 %v1012
        %1217 = vmatprep.subr.bf16.mxu0 0
        %1218 = vmatpush1.bf16.msra.mxu0 %v1009
        %1219 = vmatprep.subr.bf16.mxu0 0
        %1220 = vmatpush1.bf16.msra.mxu0 %v1006
        %1221 = vmatprep.subr.bf16.mxu0 0
        %1222 = vmatpush2.bf16.msra.mxu0 0
        %1223 = vmatprep.subr.bf16.mxu0 0
        %1224 = vmatpush2.bf16.msra.mxu0 0
        %1225 = vmatprep.subr.bf16.mxu0 0
        %1226 = vmatpush2.bf16.msra.mxu0 0
        %1227 = vmatprep.subr.bf16.mxu0 0
        %1228 = vmatpush2.bf16.msra.mxu0 0
        %1229 = vmatprep.subr.bf16.mxu0 0
        %1230 = vmatpush2.bf16.msra.mxu0 0
        %1231 = vmatprep.subr.bf16.mxu0 0
        %1232 = vmatpush2.bf16.msra.mxu0 0
        %1233 = vmatprep.subr.bf16.mxu0 0
        %1234 = vmatpush2.bf16.msra.mxu0 0
        %1235 = vmatprep.subr.bf16.mxu0 0
        %1236 = vmatpush2.bf16.msra.mxu0 0
        %1237 = vmatprep.mubr.bf16.mxu0 0
        %1238 = vmatmul.mubr.bf16.gmra.mxu0 %v879
        %v1239 = vpop.f32.mrf.mxu0
        %v1240 = vadd.f32 0.0, %v1239
        %v1241 = vpop.f32.mrf.mxu0
        %v1242 = vpop.f32.mrf.mxu0
        %v1243 = vadd.f32 0.0, %v1242
        %v1244 = vpop.f32.mrf.mxu0
        %1245 = vmatprep.mubr.bf16.mxu0 0
        %1246 = vmatmul.mubr.bf16.gmra.mxu0 %v880
        %v1247 = vpop.f32.mrf.mxu0
        %v1248 = vadd.f32 0.0, %v1247
        %v1249 = vpop.f32.mrf.mxu0
        %v1250 = vpop.f32.mrf.mxu0
        %v1251 = vadd.f32 0.0, %v1250
        %v1252 = vpop.f32.mrf.mxu0
        %1253 = vmatprep.mubr.bf16.mxu0 0
        %1254 = vmatmul.mubr.bf16.gmra.mxu0 %v881
        %v1255 = vpop.f32.mrf.mxu0
        %v1256 = vadd.f32 0.0, %v1255
        %v1257 = vpop.f32.mrf.mxu0
        %v1258 = vpop.f32.mrf.mxu0
        %v1259 = vadd.f32 0.0, %v1258
        %v1260 = vpop.f32.mrf.mxu0
        %1261 = vmatprep.mubr.bf16.mxu0 0
        %1262 = vmatmul.mubr.bf16.gmra.mxu0 %v882
        %v1263 = vpop.f32.mrf.mxu0
        %v1264 = vadd.f32 0.0, %v1263
        %v1265 = vpop.f32.mrf.mxu0
        %v1266 = vpop.f32.mrf.mxu0
        %v1267 = vadd.f32 0.0, %v1266
        %v1268 = vpop.f32.mrf.mxu0
        %1269 = vmatprep.mubr.bf16.mxu0 0
        %1270 = vmatmul.mubr.bf16.gmra.mxu0 %v883
        %v1271 = vpop.f32.mrf.mxu0
        %v1272 = vadd.f32 0.0, %v1271
        %v1273 = vpop.f32.mrf.mxu0
        %v1274 = vpop.f32.mrf.mxu0
        %v1275 = vadd.f32 0.0, %v1274
        %v1276 = vpop.f32.mrf.mxu0
        %1277 = vmatprep.mubr.bf16.mxu0 0
        %1278 = vmatmul.mubr.bf16.gmra.mxu0 %v884
        %v1279 = vpop.f32.mrf.mxu0
        %v1280 = vadd.f32 0.0, %v1279
        %v1281 = vpop.f32.mrf.mxu0
        %v1282 = vpop.f32.mrf.mxu0
        %v1283 = vadd.f32 0.0, %v1282
        %v1284 = vpop.f32.mrf.mxu0
        %1285 = vmatprep.mubr.bf16.mxu0 0
        %1286 = vmatmul.mubr.bf16.gmra.mxu0 %v885
        %v1287 = vpop.f32.mrf.mxu0
        %v1288 = vadd.f32 0.0, %v1287
        %v1289 = vpop.f32.mrf.mxu0
        %v1290 = vpop.f32.mrf.mxu0
        %v1291 = vadd.f32 0.0, %v1290
        %v1292 = vpop.f32.mrf.mxu0
        %1293 = vmatprep.mubr.bf16.mxu0 0
        %1294 = vmatmul.mubr.bf16.gmra.mxu0 %v886
        %v1295 = vpop.f32.mrf.mxu0
        %v1296 = vadd.f32 0.0, %v1295
        %v1297 = vpop.f32.mrf.mxu0
        %v1298 = vpop.f32.mrf.mxu0
        %v1299 = vadd.f32 0.0, %v1298
        %v1300 = vpop.f32.mrf.mxu0
        %1301 = vmatprep.mubr.bf16.mxu0 0
        %1302 = vmatmul.mubr.bf16.gmra.mxu0 %v887
        %v1303 = vpop.f32.mrf.mxu0
        %v1304 = vadd.f32 0.0, %v1303
        %v1305 = vpop.f32.mrf.mxu0
        %v1306 = vpop.f32.mrf.mxu0
        %v1307 = vadd.f32 0.0, %v1306
        %v1308 = vpop.f32.mrf.mxu0
        %1309 = vmatprep.mubr.bf16.mxu0 0
        %1310 = vmatmul.mubr.bf16.gmra.mxu0 %v888
        %v1311 = vpop.f32.mrf.mxu0
        %v1312 = vadd.f32 0.0, %v1311
        %v1313 = vpop.f32.mrf.mxu0
        %v1314 = vpop.f32.mrf.mxu0
        %v1315 = vadd.f32 0.0, %v1314
        %v1316 = vpop.f32.mrf.mxu0
        %1317 = vmatprep.mubr.bf16.mxu0 0
        %1318 = vmatmul.mubr.bf16.gmra.mxu0 %v889
        %v1319 = vpop.f32.mrf.mxu0
        %v1320 = vadd.f32 0.0, %v1319
        %v1321 = vpop.f32.mrf.mxu0
        %v1322 = vpop.f32.mrf.mxu0
        %v1323 = vadd.f32 0.0, %v1322
        %v1324 = vpop.f32.mrf.mxu0
        %1325 = vmatprep.mubr.bf16.mxu0 0
        %1326 = vmatmul.mubr.bf16.gmra.mxu0 %v890
        %v1327 = vpop.f32.mrf.mxu0
        %v1328 = vadd.f32 0.0, %v1327
        %v1329 = vpop.f32.mrf.mxu0
        %v1330 = vpop.f32.mrf.mxu0
        %v1331 = vadd.f32 0.0, %v1330
        %v1332 = vpop.f32.mrf.mxu0
        %1333 = vdwg.mxu0
        %v1334 = vrot.slane %v1087, 7
        %v1335 = vrot.slane %v1097, 7
        %v1336 = vrot.slane %v1107, 7
        %v1337 = vrot.slane %v1117, 7
        %v1338 = vrot.slane %v1127, 7
        %v1339 = vrot.slane %v1137, 7
        %v1340 = vrot.slane %v1147, 7
        %v1341 = vrot.slane %v1157, 7
        %v1342 = vrot.slane %v1167, 7
        %v1343 = vrot.slane %v1177, 7
        %v1344 = vrot.slane %v1187, 7
        %v1345 = vrot.slane %v1197, 7
        %v1346 = vrot.slane %v1091, 7
        %v1347 = vrot.slane %v1101, 7
        %v1348 = vrot.slane %v1111, 7
        %v1349 = vrot.slane %v1121, 7
        %v1350 = vrot.slane %v1131, 7
        %v1351 = vrot.slane %v1141, 7
        %v1352 = vrot.slane %v1151, 7
        %v1353 = vrot.slane %v1161, 7
        %v1354 = vrot.slane %v1171, 7
        %v1355 = vrot.slane %v1181, 7
        %v1356 = vrot.slane %v1191, 7
        %v1357 = vrot.slane %v1201, 7
        %vm1358 = vcmp.lt.s32.totalorder %v264, 1
        %v1359 = vsel %vm1358, %v1334, %v1346
        %v1360 = vsel %vm1358, %v1335, %v1347
        %v1361 = vsel %vm1358, %v1336, %v1348
        %v1362 = vsel %vm1358, %v1337, %v1349
        %v1363 = vsel %vm1358, %v1338, %v1350
        %v1364 = vsel %vm1358, %v1339, %v1351
        %v1365 = vsel %vm1358, %v1340, %v1352
        %v1366 = vsel %vm1358, %v1341, %v1353
        %v1367 = vsel %vm1358, %v1342, %v1354
        %v1368 = vsel %vm1358, %v1343, %v1355
        %v1369 = vsel %vm1358, %v1344, %v1356
        %v1370 = vsel %vm1358, %v1345, %v1357
        %v1371 = vsel %vm1358, %v1346, %v1334
        %v1372 = vsel %vm1358, %v1347, %v1335
        %v1373 = vsel %vm1358, %v1348, %v1336
        %v1374 = vsel %vm1358, %v1349, %v1337
        %v1375 = vsel %vm1358, %v1350, %v1338
        %v1376 = vsel %vm1358, %v1351, %v1339
        %v1377 = vsel %vm1358, %v1352, %v1340
        %v1378 = vsel %vm1358, %v1353, %v1341
        %v1379 = vsel %vm1358, %v1354, %v1342
        %v1380 = vsel %vm1358, %v1355, %v1343
        %v1381 = vsel %vm1358, %v1356, %v1344
        %v1382 = vsel %vm1358, %v1357, %v1345
        %v1383 = vsel %vm280, 1, 0
        %v1384 = vsel %vm281, 1, 0
        %vm1385 = vcmp.eq.s32.totalorder %v1383, 1
        %vm1386 = vcmp.eq.s32.totalorder %v1384, 1
        %v1387 = vsel %vm1385, %v1371, 0.0
        %v1388 = vsel %vm1386, %v1359, 0.0
        %v1389 = vsel %vm1385, %v1372, 0.0
        %v1390 = vsel %vm1386, %v1360, 0.0
        %v1391 = vsel %vm1385, %v1373, 0.0
        %v1392 = vsel %vm1386, %v1361, 0.0
        %v1393 = vsel %vm1385, %v1374, 0.0
        %v1394 = vsel %vm1386, %v1362, 0.0
        %v1395 = vsel %vm1385, %v1375, 0.0
        %v1396 = vsel %vm1386, %v1363, 0.0
        %v1397 = vsel %vm1385, %v1376, 0.0
        %v1398 = vsel %vm1386, %v1364, 0.0
        %v1399 = vsel %vm1385, %v1377, 0.0
        %v1400 = vsel %vm1386, %v1365, 0.0
        %v1401 = vsel %vm1385, %v1378, 0.0
        %v1402 = vsel %vm1386, %v1366, 0.0
        %v1403 = vsel %vm1385, %v1379, 0.0
        %v1404 = vsel %vm1386, %v1367, 0.0
        %v1405 = vsel %vm1385, %v1380, 0.0
        %v1406 = vsel %vm1386, %v1368, 0.0
        %v1407 = vsel %vm1385, %v1381, 0.0
        %v1408 = vsel %vm1386, %v1369, 0.0
        %v1409 = vsel %vm1385, %v1382, 0.0
        %v1410 = vsel %vm1386, %v1370, 0.0
        %v1411 = vadd.f32 %v1089, %v1387
        %v1412 = vadd.f32 %v1093, %v1388
        %v1413 = vadd.f32 %v1099, %v1389
        %v1414 = vadd.f32 %v1103, %v1390
        %v1415 = vadd.f32 %v1109, %v1391
        %v1416 = vadd.f32 %v1113, %v1392
        %v1417 = vadd.f32 %v1119, %v1393
        %v1418 = vadd.f32 %v1123, %v1394
        %v1419 = vadd.f32 %v1129, %v1395
        %v1420 = vadd.f32 %v1133, %v1396
        %v1421 = vadd.f32 %v1139, %v1397
        %v1422 = vadd.f32 %v1143, %v1398
        %v1423 = vadd.f32 %v1149, %v1399
        %v1424 = vadd.f32 %v1153, %v1400
        %v1425 = vadd.f32 %v1159, %v1401
        %v1426 = vadd.f32 %v1163, %v1402
        %v1427 = vadd.f32 %v1169, %v1403
        %v1428 = vadd.f32 %v1173, %v1404
        %v1429 = vadd.f32 %v1179, %v1405
        %v1430 = vadd.f32 %v1183, %v1406
        %v1431 = vadd.f32 %v1189, %v1407
        %v1432 = vadd.f32 %v1193, %v1408
        %v1433 = vadd.f32 %v1199, %v1409
        %v1434 = vadd.f32 %v1203, %v1410
        %v1435 = vrot.slane %v1240, 1
        %v1436 = vrot.slane %v1248, 1
        %v1437 = vrot.slane %v1256, 1
        %v1438 = vrot.slane %v1264, 1
        %v1439 = vrot.slane %v1272, 1
        %v1440 = vrot.slane %v1280, 1
        %v1441 = vrot.slane %v1288, 1
        %v1442 = vrot.slane %v1296, 1
        %v1443 = vrot.slane %v1304, 1
        %v1444 = vrot.slane %v1312, 1
        %v1445 = vrot.slane %v1320, 1
        %v1446 = vrot.slane %v1328, 1
        %v1447 = vrot.slane %v1243, 1
        %v1448 = vrot.slane %v1251, 1
        %v1449 = vrot.slane %v1259, 1
        %v1450 = vrot.slane %v1267, 1
        %v1451 = vrot.slane %v1275, 1
        %v1452 = vrot.slane %v1283, 1
        %v1453 = vrot.slane %v1291, 1
        %v1454 = vrot.slane %v1299, 1
        %v1455 = vrot.slane %v1307, 1
        %v1456 = vrot.slane %v1315, 1
        %v1457 = vrot.slane %v1323, 1
        %v1458 = vrot.slane %v1331, 1
        %vm1459 = vcmp.lt.s32.totalorder %v264, 7
        %v1460 = vsel %vm1459, %v1435, %v1447
        %v1461 = vsel %vm1459, %v1436, %v1448
        %v1462 = vsel %vm1459, %v1437, %v1449
        %v1463 = vsel %vm1459, %v1438, %v1450
        %v1464 = vsel %vm1459, %v1439, %v1451
        %v1465 = vsel %vm1459, %v1440, %v1452
        %v1466 = vsel %vm1459, %v1441, %v1453
        %v1467 = vsel %vm1459, %v1442, %v1454
        %v1468 = vsel %vm1459, %v1443, %v1455
        %v1469 = vsel %vm1459, %v1444, %v1456
        %v1470 = vsel %vm1459, %v1445, %v1457
        %v1471 = vsel %vm1459, %v1446, %v1458
        %v1472 = vsel %vm1459, %v1447, %v1435
        %v1473 = vsel %vm1459, %v1448, %v1436
        %v1474 = vsel %vm1459, %v1449, %v1437
        %v1475 = vsel %vm1459, %v1450, %v1438
        %v1476 = vsel %vm1459, %v1451, %v1439
        %v1477 = vsel %vm1459, %v1452, %v1440
        %v1478 = vsel %vm1459, %v1453, %v1441
        %v1479 = vsel %vm1459, %v1454, %v1442
        %v1480 = vsel %vm1459, %v1455, %v1443
        %v1481 = vsel %vm1459, %v1456, %v1444
        %v1482 = vsel %vm1459, %v1457, %v1445
        %v1483 = vsel %vm1459, %v1458, %v1446
        %v1484 = vsel %vm288, 1, 0
        %v1485 = vsel %vm289, 1, 0
        %vm1486 = vcmp.eq.s32.totalorder %v1484, 1
        %vm1487 = vcmp.eq.s32.totalorder %v1485, 1
        %v1488 = vsel %vm1486, %v1460, 0.0
        %v1489 = vsel %vm1487, %v1472, 0.0
        %v1490 = vsel %vm1486, %v1461, 0.0
        %v1491 = vsel %vm1487, %v1473, 0.0
        %v1492 = vsel %vm1486, %v1462, 0.0
        %v1493 = vsel %vm1487, %v1474, 0.0
        %v1494 = vsel %vm1486, %v1463, 0.0
        %v1495 = vsel %vm1487, %v1475, 0.0
        %v1496 = vsel %vm1486, %v1464, 0.0
        %v1497 = vsel %vm1487, %v1476, 0.0
        %v1498 = vsel %vm1486, %v1465, 0.0
        %v1499 = vsel %vm1487, %v1477, 0.0
        %v1500 = vsel %vm1486, %v1466, 0.0
        %v1501 = vsel %vm1487, %v1478, 0.0
        %v1502 = vsel %vm1486, %v1467, 0.0
        %v1503 = vsel %vm1487, %v1479, 0.0
        %v1504 = vsel %vm1486, %v1468, 0.0
        %v1505 = vsel %vm1487, %v1480, 0.0
        %v1506 = vsel %vm1486, %v1469, 0.0
        %v1507 = vsel %vm1487, %v1481, 0.0
        %v1508 = vsel %vm1486, %v1470, 0.0
        %v1509 = vsel %vm1487, %v1482, 0.0
        %v1510 = vsel %vm1486, %v1471, 0.0
        %v1511 = vsel %vm1487, %v1483, 0.0
        %v1512 = vadd.f32 %v1411, %v1488
        %v1513 = vadd.f32 %v1412, %v1489
        %v1514 = vadd.f32 %v1413, %v1490
        %v1515 = vadd.f32 %v1414, %v1491
        %v1516 = vadd.f32 %v1415, %v1492
        %v1517 = vadd.f32 %v1416, %v1493
        %v1518 = vadd.f32 %v1417, %v1494
        %v1519 = vadd.f32 %v1418, %v1495
        %v1520 = vadd.f32 %v1419, %v1496
        %v1521 = vadd.f32 %v1420, %v1497
        %v1522 = vadd.f32 %v1421, %v1498
        %v1523 = vadd.f32 %v1422, %v1499
        %v1524 = vadd.f32 %v1423, %v1500
        %v1525 = vadd.f32 %v1424, %v1501
        %v1526 = vadd.f32 %v1425, %v1502
        %v1527 = vadd.f32 %v1426, %v1503
        %v1528 = vadd.f32 %v1427, %v1504
        %v1529 = vadd.f32 %v1428, %v1505
        %v1530 = vadd.f32 %v1429, %v1506
        %v1531 = vadd.f32 %v1430, %v1507
        %v1532 = vadd.f32 %v1431, %v1508
        %v1533 = vadd.f32 %v1432, %v1509
        %v1534 = vadd.f32 %v1433, %v1510
        %v1535 = vadd.f32 %v1434, %v1511
        %v1536 = vld [vmem:[#allocation7 + $0x1] sm:$0x1]
        %v1537 = vlaneseq
        %v1538 = vshrl.u32 %v1537, 7
        %v1539 = vsub.s32 0, %v1538
        %v1540 = vrot.slane %v1536, %v1539
        %v1541 = vmul.f32 %v1512, %v1540
        %v1542 = vmul.f32 %v1513, %v1540
        %v1543 = vmul.f32 %v1514, %v1540
        %v1544 = vmul.f32 %v1515, %v1540
        %v1545 = vmul.f32 %v1516, %v1540
        %v1546 = vmul.f32 %v1517, %v1540
        %v1547 = vmul.f32 %v1518, %v1540
        %v1548 = vmul.f32 %v1519, %v1540
        %v1549 = vmul.f32 %v1520, %v1540
        %v1550 = vmul.f32 %v1521, %v1540
        %v1551 = vmul.f32 %v1522, %v1540
        %v1552 = vmul.f32 %v1523, %v1540
        %v1553 = vmul.f32 %v1524, %v1540
        %v1554 = vmul.f32 %v1525, %v1540
        %v1555 = vmul.f32 %v1526, %v1540
        %v1556 = vmul.f32 %v1527, %v1540
        %v1557 = vmul.f32 %v1528, %v1540
        %v1558 = vmul.f32 %v1529, %v1540
        %v1559 = vmul.f32 %v1530, %v1540
        %v1560 = vmul.f32 %v1531, %v1540
        %v1561 = vmul.f32 %v1532, %v1540
        %v1562 = vmul.f32 %v1533, %v1540
        %v1563 = vmul.f32 %v1534, %v1540
        %v1564 = vmul.f32 %v1535, %v1540
        %v1565 = vld [vmem:[#allocation7 + $0x2] sm:$0x1]
        %v1566 = vlaneseq
        %v1567 = vshrl.u32 %v1566, 7
        %v1568 = vsub.s32 0, %v1567
        %v1569 = vrot.slane %v1565, %v1568
        %v1570 = vadd.f32 %v1541, %v1569
        %v1571 = vadd.f32 %v1542, %v1569
        %v1572 = vadd.f32 %v1543, %v1569
        %v1573 = vadd.f32 %v1544, %v1569
        %v1574 = vadd.f32 %v1545, %v1569
        %v1575 = vadd.f32 %v1546, %v1569
        %v1576 = vadd.f32 %v1547, %v1569
        %v1577 = vadd.f32 %v1548, %v1569
        %v1578 = vadd.f32 %v1549, %v1569
        %v1579 = vadd.f32 %v1550, %v1569
        %v1580 = vadd.f32 %v1551, %v1569
        %v1581 = vadd.f32 %v1552, %v1569
        %v1582 = vadd.f32 %v1553, %v1569
        %v1583 = vadd.f32 %v1554, %v1569
        %v1584 = vadd.f32 %v1555, %v1569
        %v1585 = vadd.f32 %v1556, %v1569
        %v1586 = vadd.f32 %v1557, %v1569
        %v1587 = vadd.f32 %v1558, %v1569
        %v1588 = vadd.f32 %v1559, %v1569
        %v1589 = vadd.f32 %v1560, %v1569
        %v1590 = vadd.f32 %v1561, %v1569
        %v1591 = vadd.f32 %v1562, %v1569
        %v1592 = vadd.f32 %v1563, %v1569
        %v1593 = vadd.f32 %v1564, %v1569
        %v1594 = vmax.f32 %v1570, 0.0
        %v1595 = vmax.f32 %v1571, 0.0
        %v1596 = vmax.f32 %v1572, 0.0
        %v1597 = vmax.f32 %v1573, 0.0
        %v1598 = vmax.f32 %v1574, 0.0
        %v1599 = vmax.f32 %v1575, 0.0
        %v1600 = vmax.f32 %v1576, 0.0
        %v1601 = vmax.f32 %v1577, 0.0
        %v1602 = vmax.f32 %v1578, 0.0
        %v1603 = vmax.f32 %v1579, 0.0
        %v1604 = vmax.f32 %v1580, 0.0
        %v1605 = vmax.f32 %v1581, 0.0
        %v1606 = vmax.f32 %v1582, 0.0
        %v1607 = vmax.f32 %v1583, 0.0
        %v1608 = vmax.f32 %v1584, 0.0
        %v1609 = vmax.f32 %v1585, 0.0
        %v1610 = vmax.f32 %v1586, 0.0
        %v1611 = vmax.f32 %v1587, 0.0
        %v1612 = vmax.f32 %v1588, 0.0
        %v1613 = vmax.f32 %v1589, 0.0
        %v1614 = vmax.f32 %v1590, 0.0
        %v1615 = vmax.f32 %v1591, 0.0
        %v1616 = vmax.f32 %v1592, 0.0
        %v1617 = vmax.f32 %v1593, 0.0
        %s1618 = ssub.s32 %s232, 2
        %v1619 = vstv %s1618
        %v1620 = vadd.s32 %v1619, 1
        %v1621 = vadd.s32 %v1619, 2
        %v1622 = vadd.s32 %v1619, 3
        %v1623 = vadd.s32 %v1619, 4
        %v1624 = vadd.s32 %v1619, 5
        %v1625 = vadd.s32 %v1619, 6
        %v1626 = vadd.s32 %v1619, 7
        %v1627 = vadd.s32 %v1619, 8
        %v1628 = vadd.s32 %v1619, 9
        %v1629 = vadd.s32 %v1619, 10
        %v1630 = vadd.s32 %v1619, 11
        %vm1631 = vcmp.ge.s32.totalorder %v1619, 0
        %vm1632 = vcmp.ge.s32.totalorder %v1620, 0
        %vm1633 = vcmp.ge.s32.totalorder %v1621, 0
        %vm1634 = vcmp.ge.s32.totalorder %v1622, 0
        %vm1635 = vcmp.ge.s32.totalorder %v1623, 0
        %vm1636 = vcmp.ge.s32.totalorder %v1624, 0
        %vm1637 = vcmp.ge.s32.totalorder %v1625, 0
        %vm1638 = vcmp.ge.s32.totalorder %v1626, 0
        %vm1639 = vcmp.ge.s32.totalorder %v1627, 0
        %vm1640 = vcmp.ge.s32.totalorder %v1628, 0
        %vm1641 = vcmp.ge.s32.totalorder %v1629, 0
        %vm1642 = vcmp.ge.s32.totalorder %v1630, 0
        %vm1643 = vcmp.lt.s32.totalorder %v1619, 20
        %vm1644 = vcmp.lt.s32.totalorder %v1620, 20
        %vm1645 = vcmp.lt.s32.totalorder %v1621, 20
        %vm1646 = vcmp.lt.s32.totalorder %v1622, 20
        %vm1647 = vcmp.lt.s32.totalorder %v1623, 20
        %vm1648 = vcmp.lt.s32.totalorder %v1624, 20
        %vm1649 = vcmp.lt.s32.totalorder %v1625, 20
        %vm1650 = vcmp.lt.s32.totalorder %v1626, 20
        %vm1651 = vcmp.lt.s32.totalorder %v1627, 20
        %vm1652 = vcmp.lt.s32.totalorder %v1628, 20
        %vm1653 = vcmp.lt.s32.totalorder %v1629, 20
        %vm1654 = vcmp.lt.s32.totalorder %v1630, 20
        %vm1655 = vmand %vm1631, %vm1643
        %vm1656 = vmand %vm1632, %vm1644
        %vm1657 = vmand %vm1633, %vm1645
        %vm1658 = vmand %vm1634, %vm1646
        %vm1659 = vmand %vm1635, %vm1647
        %vm1660 = vmand %vm1636, %vm1648
        %vm1661 = vmand %vm1637, %vm1649
        %vm1662 = vmand %vm1638, %vm1650
        %vm1663 = vmand %vm1639, %vm1651
        %vm1664 = vmand %vm1640, %vm1652
        %vm1665 = vmand %vm1641, %vm1653
        %vm1666 = vmand %vm1642, %vm1654
        %v1667 = vsel %vm1655, 1, 0
        %v1668 = vsel %vm1656, 1, 0
        %v1669 = vsel %vm1657, 1, 0
        %v1670 = vsel %vm1658, 1, 0
        %v1671 = vsel %vm1659, 1, 0
        %v1672 = vsel %vm1660, 1, 0
        %v1673 = vsel %vm1661, 1, 0
        %v1674 = vsel %vm1662, 1, 0
        %v1675 = vsel %vm1663, 1, 0
        %v1676 = vsel %vm1664, 1, 0
        %v1677 = vsel %vm1665, 1, 0
        %v1678 = vsel %vm1666, 1, 0
        %vm1679 = vcmp.eq.s32.totalorder %v1667, 1
        %vm1680 = vcmp.eq.s32.totalorder %v1668, 1
        %vm1681 = vcmp.eq.s32.totalorder %v1669, 1
        %vm1682 = vcmp.eq.s32.totalorder %v1670, 1
        %vm1683 = vcmp.eq.s32.totalorder %v1671, 1
        %vm1684 = vcmp.eq.s32.totalorder %v1672, 1
        %vm1685 = vcmp.eq.s32.totalorder %v1673, 1
        %vm1686 = vcmp.eq.s32.totalorder %v1674, 1
        %vm1687 = vcmp.eq.s32.totalorder %v1675, 1
        %vm1688 = vcmp.eq.s32.totalorder %v1676, 1
        %vm1689 = vcmp.eq.s32.totalorder %v1677, 1
        %vm1690 = vcmp.eq.s32.totalorder %v1678, 1
        %v1691 = vsel %vm1679, %v1594, 0.0
        %v1692 = vsel %vm1679, %v1595, 0.0
        %v1693 = vsel %vm1680, %v1596, 0.0
        %v1694 = vsel %vm1680, %v1597, 0.0
        %v1695 = vsel %vm1681, %v1598, 0.0
        %v1696 = vsel %vm1681, %v1599, 0.0
        %v1697 = vsel %vm1682, %v1600, 0.0
        %v1698 = vsel %vm1682, %v1601, 0.0
        %v1699 = vsel %vm1683, %v1602, 0.0
        %v1700 = vsel %vm1683, %v1603, 0.0
        %v1701 = vsel %vm1684, %v1604, 0.0
        %v1702 = vsel %vm1684, %v1605, 0.0
        %v1703 = vsel %vm1685, %v1606, 0.0
        %v1704 = vsel %vm1685, %v1607, 0.0
        %v1705 = vsel %vm1686, %v1608, 0.0
        %v1706 = vsel %vm1686, %v1609, 0.0
        %v1707 = vsel %vm1687, %v1610, 0.0
        %v1708 = vsel %vm1687, %v1611, 0.0
        %v1709 = vsel %vm1688, %v1612, 0.0
        %v1710 = vsel %vm1688, %v1613, 0.0
        %v1711 = vsel %vm1689, %v1614, 0.0
        %v1712 = vsel %vm1689, %v1615, 0.0
        %v1713 = vsel %vm1690, %v1616, 0.0
        %v1714 = vsel %vm1690, %v1617, 0.0
        %v1715 = vld [vmem:[#allocation7 + $0x3] sm:$0x1]
        %v1716 = vpack.c.bf16 %v1692, %v1691
        %v1717 = vpack.c.bf16 %v1694, %v1693
        %v1718 = vpack.c.bf16 %v1696, %v1695
        %v1719 = vpack.c.bf16 %v1698, %v1697
        %v1720 = vpack.c.bf16 %v1700, %v1699
        %v1721 = vpack.c.bf16 %v1702, %v1701
        %v1722 = vpack.c.bf16 %v1704, %v1703
        %v1723 = vpack.c.bf16 %v1706, %v1705
        %v1724 = vpack.c.bf16 %v1708, %v1707
        %v1725 = vpack.c.bf16 %v1710, %v1709
        %v1726 = vpack.c.bf16 %v1712, %v1711
        %v1727 = vpack.c.bf16 %v1714, %v1713
        %s1728 = scalar_lea.vmem [#allocation5], 384
        %v1729 = vld [vmem:[%s1728] sm:$0xff]
        %v1730 = vld [vmem:[%s1728 + $0x8] sm:$0xf]
        %v1731 = vld [vmem:[%s1728 + $0xc] sm:$0xff]
        %v1732 = vld [vmem:[%s1728 + $0x14] sm:$0xf]
        %v1733 = vld [vmem:[%s1728 + $0x18] sm:$0xff]
        %v1734 = vld [vmem:[%s1728 + $0x20] sm:$0xf]
        %v1735 = vld [vmem:[%s1728 + $0x24] sm:$0xff]
        %v1736 = vld [vmem:[%s1728 + $0x2c] sm:$0xf]
        %v1737 = vld [vmem:[%s1728 + $0x30] sm:$0xff]
        %v1738 = vld [vmem:[%s1728 + $0x38] sm:$0xf]
        %v1739 = vld [vmem:[%s1728 + $0x3c] sm:$0xff]
        %v1740 = vld [vmem:[%s1728 + $0x44] sm:$0xf]
        %v1741 = vld [vmem:[%s1728 + $0x48] sm:$0xff]
        %v1742 = vld [vmem:[%s1728 + $0x50] sm:$0xf]
        %v1743 = vld [vmem:[%s1728 + $0x54] sm:$0xff]
        %v1744 = vld [vmem:[%s1728 + $0x5c] sm:$0xf]
        %v1745 = vld [vmem:[%s1728 + $0x60] sm:$0xff]
        %v1746 = vld [vmem:[%s1728 + $0x68] sm:$0xf]
        %v1747 = vld [vmem:[%s1728 + $0x6c] sm:$0xff]
        %v1748 = vld [vmem:[%s1728 + $0x74] sm:$0xf]
        %v1749 = vld [vmem:[%s1728 + $0x78] sm:$0xff]
        %v1750 = vld [vmem:[%s1728 + $0x80] sm:$0xf]
        %v1751 = vld [vmem:[%s1728 + $0x84] sm:$0xff]
        %v1752 = vld [vmem:[%s1728 + $0x8c] sm:$0xf]
        %v1753 = vld [vmem:[%s1728 + $0x90] sm:$0xff]
        %v1754 = vld [vmem:[%s1728 + $0x98] sm:$0xf]
        %v1755 = vld [vmem:[%s1728 + $0x9c] sm:$0xff]
        %v1756 = vld [vmem:[%s1728 + $0xa4] sm:$0xf]
        %v1757 = vld [vmem:[%s1728 + $0xa8] sm:$0xff]
        %v1758 = vld [vmem:[%s1728 + $0xb0] sm:$0xf]
        %v1759 = vld [vmem:[%s1728 + $0xb4] sm:$0xff]
        %v1760 = vld [vmem:[%s1728 + $0xbc] sm:$0xf]
        %v1793 = vunpack.c.l.b16 %v1729
        %v1794 = vunpack.c.h.b16 %v1729
        %v1795 = vunpack.c.l.b16 %v1730
        %v1796 = vunpack.c.l.b16 %v1731
        %v1797 = vunpack.c.h.b16 %v1731
        %v1798 = vunpack.c.l.b16 %v1732
        %v1799 = vunpack.c.l.b16 %v1733
        %v1800 = vunpack.c.h.b16 %v1733
        %v1801 = vunpack.c.l.b16 %v1734
        %v1802 = vunpack.c.l.b16 %v1735
        %v1803 = vunpack.c.h.b16 %v1735
        %v1804 = vunpack.c.l.b16 %v1736
        %v1805 = vunpack.c.l.b16 %v1737
        %v1806 = vunpack.c.h.b16 %v1737
        %v1807 = vunpack.c.l.b16 %v1738
        %v1808 = vunpack.c.l.b16 %v1739
        %v1809 = vunpack.c.h.b16 %v1739
        %v1810 = vunpack.c.l.b16 %v1740
        %v1811 = vunpack.c.l.b16 %v1741
        %v1812 = vunpack.c.h.b16 %v1741
        %v1813 = vunpack.c.l.b16 %v1742
        %v1814 = vunpack.c.l.b16 %v1743
        %v1815 = vunpack.c.h.b16 %v1743
        %v1816 = vunpack.c.l.b16 %v1744
        %v1817 = vunpack.c.l.b16 %v1745
        %v1818 = vunpack.c.h.b16 %v1745
        %v1819 = vunpack.c.l.b16 %v1746
        %v1820 = vunpack.c.l.b16 %v1747
        %v1821 = vunpack.c.h.b16 %v1747
        %v1822 = vunpack.c.l.b16 %v1748
        %v1823 = vunpack.c.l.b16 %v1749
        %v1824 = vunpack.c.h.b16 %v1749
        %v1825 = vunpack.c.l.b16 %v1750
        %v1826 = vunpack.c.l.b16 %v1751
        %v1827 = vunpack.c.h.b16 %v1751
        %v1828 = vunpack.c.l.b16 %v1752
        %v1829 = vunpack.c.l.b16 %v1753
        %v1830 = vunpack.c.h.b16 %v1753
        %v1831 = vunpack.c.l.b16 %v1754
        %v1832 = vunpack.c.l.b16 %v1755
        %v1833 = vunpack.c.h.b16 %v1755
        %v1834 = vunpack.c.l.b16 %v1756
        %v1835 = vunpack.c.l.b16 %v1757
        %v1836 = vunpack.c.h.b16 %v1757
        %v1837 = vunpack.c.l.b16 %v1758
        %v1838 = vunpack.c.l.b16 %v1759
        %v1839 = vunpack.c.h.b16 %v1759
        %v1840 = vunpack.c.l.b16 %v1760
        %v1841 = vpack.c.b16 %v1796, %v1793
        %v1842 = vpack.c.b16 %v1797, %v1794
        %v1843 = vpack.c.b16 %v1798, %v1795
        %v1844 = vpack.c.b16 %v1802, %v1799
        %v1845 = vpack.c.b16 %v1803, %v1800
        %v1846 = vpack.c.b16 %v1804, %v1801
        %v1847 = vpack.c.b16 %v1808, %v1805
        %v1848 = vpack.c.b16 %v1809, %v1806
        %v1849 = vpack.c.b16 %v1810, %v1807
        %v1850 = vpack.c.b16 %v1814, %v1811
        %v1851 = vpack.c.b16 %v1815, %v1812
        %v1852 = vpack.c.b16 %v1816, %v1813
        %v1853 = vpack.c.b16 %v1820, %v1817
        %v1854 = vpack.c.b16 %v1821, %v1818
        %v1855 = vpack.c.b16 %v1822, %v1819
        %v1856 = vpack.c.b16 %v1826, %v1823
        %v1857 = vpack.c.b16 %v1827, %v1824
        %v1858 = vpack.c.b16 %v1828, %v1825
        %v1859 = vpack.c.b16 %v1832, %v1829
        %v1860 = vpack.c.b16 %v1833, %v1830
        %v1861 = vpack.c.b16 %v1834, %v1831
        %v1862 = vpack.c.b16 %v1838, %v1835
        %v1863 = vpack.c.b16 %v1839, %v1836
        %v1864 = vpack.c.b16 %v1840, %v1837
        %1889 = vmatprep.subr.bf16.mxu0 %v1863
        %1890 = vmatpush1.bf16.msra.mxu0 %v1862
        %1891 = vmatprep.subr.bf16.mxu0 %v1860
        %1892 = vmatpush1.bf16.msra.mxu0 %v1859
        %1893 = vmatprep.subr.bf16.mxu0 %v1857
        %1894 = vmatpush1.bf16.msra.mxu0 %v1856
        %1895 = vmatprep.subr.bf16.mxu0 %v1854
        %1896 = vmatpush1.bf16.msra.mxu0 %v1853
        %1897 = vmatprep.subr.bf16.mxu0 %v1851
        %1898 = vmatpush1.bf16.msra.mxu0 %v1850
        %1899 = vmatprep.subr.bf16.mxu0 %v1848
        %1900 = vmatpush1.bf16.msra.mxu0 %v1847
        %1901 = vmatprep.subr.bf16.mxu0 %v1845
        %1902 = vmatpush1.bf16.msra.mxu0 %v1844
        %1903 = vmatprep.subr.bf16.mxu0 %v1842
        %1904 = vmatpush1.bf16.msra.mxu0 %v1841
        %1905 = vmatprep.subr.bf16.mxu0 0
        %1906 = vmatpush2.bf16.msra.mxu0 0
        %1907 = vmatprep.subr.bf16.mxu0 0
        %1908 = vmatpush2.bf16.msra.mxu0 0
        %1909 = vmatprep.subr.bf16.mxu0 0
        %1910 = vmatpush2.bf16.msra.mxu0 0
        %1911 = vmatprep.subr.bf16.mxu0 0
        %1912 = vmatpush2.bf16.msra.mxu0 0
        %1913 = vmatprep.subr.bf16.mxu0 0
        %1914 = vmatpush2.bf16.msra.mxu0 0
        %1915 = vmatprep.subr.bf16.mxu0 0
        %1916 = vmatpush2.bf16.msra.mxu0 0
        %1917 = vmatprep.subr.bf16.mxu0 0
        %1918 = vmatpush2.bf16.msra.mxu0 0
        %1919 = vmatprep.subr.bf16.mxu0 0
        %1920 = vmatpush2.bf16.msra.mxu0 0
        %1921 = vmatprep.mubr.bf16.mxu0 0
        %1922 = vmatmul.mubr.bf16.gmra.mxu0 %v1716
        %v1923 = vpop.f32.mrf.mxu0
        %v1924 = vadd.f32 0.0, %v1923
        %v1925 = vpop.f32.mrf.mxu0
        %v1926 = vpop.f32.mrf.mxu0
        %v1927 = vadd.f32 0.0, %v1926
        %v1928 = vpop.f32.mrf.mxu0
        %1929 = vmatprep.mubr.bf16.mxu0 0
        %1930 = vmatmul.mubr.bf16.gmra.mxu0 %v1717
        %v1931 = vpop.f32.mrf.mxu0
        %v1932 = vadd.f32 0.0, %v1931
        %v1933 = vpop.f32.mrf.mxu0
        %v1934 = vpop.f32.mrf.mxu0
        %v1935 = vadd.f32 0.0, %v1934
        %v1936 = vpop.f32.mrf.mxu0
        %1937 = vmatprep.mubr.bf16.mxu0 0
        %1938 = vmatmul.mubr.bf16.gmra.mxu0 %v1718
        %v1939 = vpop.f32.mrf.mxu0
        %v1940 = vadd.f32 0.0, %v1939
        %v1941 = vpop.f32.mrf.mxu0
        %v1942 = vadd.f32 0.0, %v1941
        %v1943 = vpop.f32.mrf.mxu0
        %v1944 = vadd.f32 0.0, %v1943
        %v1945 = vpop.f32.mrf.mxu0
        %v1946 = vadd.f32 0.0, %v1945
        %1947 = vmatprep.mubr.bf16.mxu0 0
        %1948 = vmatmul.mubr.bf16.gmra.mxu0 %v1719
        %v1949 = vpop.f32.mrf.mxu0
        %v1950 = vadd.f32 0.0, %v1949
        %v1951 = vpop.f32.mrf.mxu0
        %v1952 = vadd.f32 0.0, %v1951
        %v1953 = vpop.f32.mrf.mxu0
        %v1954 = vadd.f32 0.0, %v1953
        %v1955 = vpop.f32.mrf.mxu0
        %v1956 = vadd.f32 0.0, %v1955
        %1957 = vmatprep.mubr.bf16.mxu0 0
        %1958 = vmatmul.mubr.bf16.gmra.mxu0 %v1720
        %v1959 = vpop.f32.mrf.mxu0
        %v1960 = vadd.f32 0.0, %v1959
        %v1961 = vpop.f32.mrf.mxu0
        %v1962 = vadd.f32 0.0, %v1961
        %v1963 = vpop.f32.mrf.mxu0
        %v1964 = vadd.f32 0.0, %v1963
        %v1965 = vpop.f32.mrf.mxu0
        %v1966 = vadd.f32 0.0, %v1965
        %1967 = vmatprep.mubr.bf16.mxu0 0
        %1968 = vmatmul.mubr.bf16.gmra.mxu0 %v1721
        %v1969 = vpop.f32.mrf.mxu0
        %v1970 = vadd.f32 0.0, %v1969
        %v1971 = vpop.f32.mrf.mxu0
        %v1972 = vadd.f32 0.0, %v1971
        %v1973 = vpop.f32.mrf.mxu0
        %v1974 = vadd.f32 0.0, %v1973
        %v1975 = vpop.f32.mrf.mxu0
        %v1976 = vadd.f32 0.0, %v1975
        %1977 = vmatprep.mubr.bf16.mxu0 0
        %1978 = vmatmul.mubr.bf16.gmra.mxu0 %v1722
        %v1979 = vpop.f32.mrf.mxu0
        %v1980 = vadd.f32 0.0, %v1979
        %v1981 = vpop.f32.mrf.mxu0
        %v1982 = vadd.f32 0.0, %v1981
        %v1983 = vpop.f32.mrf.mxu0
        %v1984 = vadd.f32 0.0, %v1983
        %v1985 = vpop.f32.mrf.mxu0
        %v1986 = vadd.f32 0.0, %v1985
        %1987 = vmatprep.mubr.bf16.mxu0 0
        %1988 = vmatmul.mubr.bf16.gmra.mxu0 %v1723
        %v1989 = vpop.f32.mrf.mxu0
        %v1990 = vadd.f32 0.0, %v1989
        %v1991 = vpop.f32.mrf.mxu0
        %v1992 = vadd.f32 0.0, %v1991
        %v1993 = vpop.f32.mrf.mxu0
        %v1994 = vadd.f32 0.0, %v1993
        %v1995 = vpop.f32.mrf.mxu0
        %v1996 = vadd.f32 0.0, %v1995
        %1997 = vmatprep.mubr.bf16.mxu0 0
        %1998 = vmatmul.mubr.bf16.gmra.mxu0 %v1724
        %v1999 = vpop.f32.mrf.mxu0
        %v2000 = vpop.f32.mrf.mxu0
        %v2001 = vadd.f32 0.0, %v2000
        %v2002 = vpop.f32.mrf.mxu0
        %v2003 = vpop.f32.mrf.mxu0
        %v2004 = vadd.f32 0.0, %v2003
        %2005 = vmatprep.mubr.bf16.mxu0 0
        %2006 = vmatmul.mubr.bf16.gmra.mxu0 %v1725
        %v2007 = vpop.f32.mrf.mxu0
        %v2008 = vpop.f32.mrf.mxu0
        %v2009 = vadd.f32 0.0, %v2008
        %v2010 = vpop.f32.mrf.mxu0
        %v2011 = vpop.f32.mrf.mxu0
        %v2012 = vadd.f32 0.0, %v2011
        %2013 = vmatprep.mubr.bf16.mxu0 0
        %2014 = vmatmul.mubr.bf16.gmra.mxu0 %v1726
        %v2015 = vpop.f32.mrf.mxu0
        %v2016 = vpop.f32.mrf.mxu0
        %v2017 = vpop.f32.mrf.mxu0
        %v2018 = vpop.f32.mrf.mxu0
        %2019 = vmatprep.mubr.bf16.mxu0 0
        %2020 = vmatmul.mubr.bf16.gmra.mxu0 %v1727
        %v2021 = vpop.f32.mrf.mxu0
        %v2022 = vpop.f32.mrf.mxu0
        %v2023 = vpop.f32.mrf.mxu0
        %v2024 = vpop.f32.mrf.mxu0
        %2025 = vdwg.mxu0
        %2026 = vmatprep.subr.bf16.mxu0 0
        %2027 = vmatpush1.bf16.msra.mxu0 %v1864
        %2028 = vmatprep.subr.bf16.mxu0 0
        %2029 = vmatpush1.bf16.msra.mxu0 %v1861
        %2030 = vmatprep.subr.bf16.mxu0 0
        %2031 = vmatpush1.bf16.msra.mxu0 %v1858
        %2032 = vmatprep.subr.bf16.mxu0 0
        %2033 = vmatpush1.bf16.msra.mxu0 %v1855
        %2034 = vmatprep.subr.bf16.mxu0 0
        %2035 = vmatpush1.bf16.msra.mxu0 %v1852
        %2036 = vmatprep.subr.bf16.mxu0 0
        %2037 = vmatpush1.bf16.msra.mxu0 %v1849
        %2038 = vmatprep.subr.bf16.mxu0 0
        %2039 = vmatpush1.bf16.msra.mxu0 %v1846
        %2040 = vmatprep.subr.bf16.mxu0 0
        %2041 = vmatpush1.bf16.msra.mxu0 %v1843
        %2042 = vmatprep.subr.bf16.mxu0 0
        %2043 = vmatpush2.bf16.msra.mxu0 0
        %2044 = vmatprep.subr.bf16.mxu0 0
        %2045 = vmatpush2.bf16.msra.mxu0 0
        %2046 = vmatprep.subr.bf16.mxu0 0
        %2047 = vmatpush2.bf16.msra.mxu0 0
        %2048 = vmatprep.subr.bf16.mxu0 0
        %2049 = vmatpush2.bf16.msra.mxu0 0
        %2050 = vmatprep.subr.bf16.mxu0 0
        %2051 = vmatpush2.bf16.msra.mxu0 0
        %2052 = vmatprep.subr.bf16.mxu0 0
        %2053 = vmatpush2.bf16.msra.mxu0 0
        %2054 = vmatprep.subr.bf16.mxu0 0
        %2055 = vmatpush2.bf16.msra.mxu0 0
        %2056 = vmatprep.subr.bf16.mxu0 0
        %2057 = vmatpush2.bf16.msra.mxu0 0
        %2058 = vmatprep.mubr.bf16.mxu0 0
        %2059 = vmatmul.mubr.bf16.gmra.mxu0 %v1716
        %v2060 = vpop.f32.mrf.mxu0
        %v2061 = vpop.f32.mrf.mxu0
        %v2062 = vpop.f32.mrf.mxu0
        %v2063 = vpop.f32.mrf.mxu0
        %2064 = vmatprep.mubr.bf16.mxu0 0
        %2065 = vmatmul.mubr.bf16.gmra.mxu0 %v1717
        %v2066 = vpop.f32.mrf.mxu0
        %v2067 = vpop.f32.mrf.mxu0
        %v2068 = vpop.f32.mrf.mxu0
        %v2069 = vpop.f32.mrf.mxu0
        %2070 = vmatprep.mubr.bf16.mxu0 0
        %2071 = vmatmul.mubr.bf16.gmra.mxu0 %v1718
        %v2072 = vpop.f32.mrf.mxu0
        %v2073 = vpop.f32.mrf.mxu0
        %v2074 = vpop.f32.mrf.mxu0
        %v2075 = vpop.f32.mrf.mxu0
        %2076 = vmatprep.mubr.bf16.mxu0 0
        %2077 = vmatmul.mubr.bf16.gmra.mxu0 %v1719
        %v2078 = vpop.f32.mrf.mxu0
        %v2079 = vpop.f32.mrf.mxu0
        %v2080 = vpop.f32.mrf.mxu0
        %v2081 = vpop.f32.mrf.mxu0
        %2082 = vmatprep.mubr.bf16.mxu0 0
        %2083 = vmatmul.mubr.bf16.gmra.mxu0 %v1720
        %v2084 = vpop.f32.mrf.mxu0
        %v2085 = vadd.f32 0.0, %v2084
        %v2086 = vpop.f32.mrf.mxu0
        %v2087 = vpop.f32.mrf.mxu0
        %v2088 = vadd.f32 0.0, %v2087
        %v2089 = vpop.f32.mrf.mxu0
        %2090 = vmatprep.mubr.bf16.mxu0 0
        %2091 = vmatmul.mubr.bf16.gmra.mxu0 %v1721
        %v2092 = vpop.f32.mrf.mxu0
        %v2093 = vadd.f32 0.0, %v2092
        %v2094 = vpop.f32.mrf.mxu0
        %v2095 = vpop.f32.mrf.mxu0
        %v2096 = vadd.f32 0.0, %v2095
        %v2097 = vpop.f32.mrf.mxu0
        %2098 = vmatprep.mubr.bf16.mxu0 0
        %2099 = vmatmul.mubr.bf16.gmra.mxu0 %v1722
        %v2100 = vpop.f32.mrf.mxu0
        %v2101 = vadd.f32 0.0, %v2100
        %v2102 = vpop.f32.mrf.mxu0
        %v2103 = vpop.f32.mrf.mxu0
        %v2104 = vadd.f32 0.0, %v2103
        %v2105 = vpop.f32.mrf.mxu0
        %2106 = vmatprep.mubr.bf16.mxu0 0
        %2107 = vmatmul.mubr.bf16.gmra.mxu0 %v1723
        %v2108 = vpop.f32.mrf.mxu0
        %v2109 = vadd.f32 0.0, %v2108
        %v2110 = vpop.f32.mrf.mxu0
        %v2111 = vpop.f32.mrf.mxu0
        %v2112 = vadd.f32 0.0, %v2111
        %v2113 = vpop.f32.mrf.mxu0
        %2114 = vmatprep.mubr.bf16.mxu0 0
        %2115 = vmatmul.mubr.bf16.gmra.mxu0 %v1724
        %v2116 = vpop.f32.mrf.mxu0
        %v2117 = vadd.f32 0.0, %v2116
        %v2118 = vpop.f32.mrf.mxu0
        %v2119 = vpop.f32.mrf.mxu0
        %v2120 = vadd.f32 0.0, %v2119
        %v2121 = vpop.f32.mrf.mxu0
        %2122 = vmatprep.mubr.bf16.mxu0 0
        %2123 = vmatmul.mubr.bf16.gmra.mxu0 %v1725
        %v2124 = vpop.f32.mrf.mxu0
        %v2125 = vadd.f32 0.0, %v2124
        %v2126 = vpop.f32.mrf.mxu0
        %v2127 = vpop.f32.mrf.mxu0
        %v2128 = vadd.f32 0.0, %v2127
        %v2129 = vpop.f32.mrf.mxu0
        %2130 = vmatprep.mubr.bf16.mxu0 0
        %2131 = vmatmul.mubr.bf16.gmra.mxu0 %v1726
        %v2132 = vpop.f32.mrf.mxu0
        %v2133 = vadd.f32 0.0, %v2132
        %v2134 = vpop.f32.mrf.mxu0
        %v2135 = vpop.f32.mrf.mxu0
        %v2136 = vadd.f32 0.0, %v2135
        %v2137 = vpop.f32.mrf.mxu0
        %2138 = vmatprep.mubr.bf16.mxu0 0
        %2139 = vmatmul.mubr.bf16.gmra.mxu0 %v1727
        %v2140 = vpop.f32.mrf.mxu0
        %v2141 = vadd.f32 0.0, %v2140
        %v2142 = vpop.f32.mrf.mxu0
        %v2143 = vpop.f32.mrf.mxu0
        %v2144 = vadd.f32 0.0, %v2143
        %v2145 = vpop.f32.mrf.mxu0
        %2146 = vdwg.mxu0
        %v2147 = vlaneseq
        %v2148 = vshrl.u32 %v2147, 7
        %v2149 = vsub.s32 0, %v2148
        %v2150 = vrot.slane %v1715, %v2149
        %v2151 = vadd.f32 %v2150, %v1942
        %v2152 = vadd.f32 %v2150, %v1946
        %v2153 = vadd.f32 %v2150, %v1952
        %v2154 = vadd.f32 %v2150, %v1956
        %v2155 = vadd.f32 %v2150, %v1962
        %v2156 = vadd.f32 %v2150, %v1966
        %v2157 = vadd.f32 %v2150, %v1972
        %v2158 = vadd.f32 %v2150, %v1976
        %v2159 = vadd.f32 %v2150, %v1982
        %v2160 = vadd.f32 %v2150, %v1986
        %v2161 = vadd.f32 %v2150, %v1992
        %v2162 = vadd.f32 %v2150, %v1996
        %v2163 = vadd.f32 %v2150, %v2001
        %v2164 = vadd.f32 %v2150, %v2004
        %v2165 = vadd.f32 %v2150, %v2009
        %v2166 = vadd.f32 %v2150, %v2012
        %v2167 = vadd.f32 %v2151, %v1924
        %v2168 = vadd.f32 %v2152, %v1927
        %v2169 = vadd.f32 %v2153, %v1932
        %v2170 = vadd.f32 %v2154, %v1935
        %v2171 = vadd.f32 %v2155, %v1940
        %v2172 = vadd.f32 %v2156, %v1944
        %v2173 = vadd.f32 %v2157, %v1950
        %v2174 = vadd.f32 %v2158, %v1954
        %v2175 = vadd.f32 %v2159, %v1960
        %v2176 = vadd.f32 %v2160, %v1964
        %v2177 = vadd.f32 %v2161, %v1970
        %v2178 = vadd.f32 %v2162, %v1974
        %v2179 = vadd.f32 %v2163, %v1980
        %v2180 = vadd.f32 %v2164, %v1984
        %v2181 = vadd.f32 %v2165, %v1990
        %v2182 = vadd.f32 %v2166, %v1994
        %v2183 = vadd.f32 %v2167, %v2085
        %v2184 = vadd.f32 %v2168, %v2088
        %v2185 = vadd.f32 %v2169, %v2093
        %v2186 = vadd.f32 %v2170, %v2096
        %v2187 = vadd.f32 %v2171, %v2101
        %v2188 = vadd.f32 %v2172, %v2104
        %v2189 = vadd.f32 %v2173, %v2109
        %v2190 = vadd.f32 %v2174, %v2112
        %v2191 = vadd.f32 %v2175, %v2117
        %v2192 = vadd.f32 %v2176, %v2120
        %v2193 = vadd.f32 %v2177, %v2125
        %v2194 = vadd.f32 %v2178, %v2128
        %v2195 = vadd.f32 %v2179, %v2133
        %v2196 = vadd.f32 %v2180, %v2136
        %v2197 = vadd.f32 %v2181, %v2141
        %v2198 = vadd.f32 %v2182, %v2144
        %v2199 = vmax.f32 %v2183, 0.0
        %v2200 = vmax.f32 %v2184, 0.0
        %v2201 = vmax.f32 %v2185, 0.0
        %v2202 = vmax.f32 %v2186, 0.0
        %v2203 = vmax.f32 %v2187, 0.0
        %v2204 = vmax.f32 %v2188, 0.0
        %v2205 = vmax.f32 %v2189, 0.0
        %v2206 = vmax.f32 %v2190, 0.0
        %v2207 = vmax.f32 %v2191, 0.0
        %v2208 = vmax.f32 %v2192, 0.0
        %v2209 = vmax.f32 %v2193, 0.0
        %v2210 = vmax.f32 %v2194, 0.0
        %v2211 = vmax.f32 %v2195, 0.0
        %v2212 = vmax.f32 %v2196, 0.0
        %v2213 = vmax.f32 %v2197, 0.0
        %v2214 = vmax.f32 %v2198, 0.0
        %v2215 = vpack.c.bf16 %v2200, %v2199
        %v2216 = vpack.c.bf16 %v2202, %v2201
        %v2217 = vpack.c.bf16 %v2204, %v2203
        %v2218 = vpack.c.bf16 %v2206, %v2205
        %v2219 = vpack.c.bf16 %v2208, %v2207
        %v2220 = vpack.c.bf16 %v2210, %v2209
        %v2221 = vpack.c.bf16 %v2212, %v2211
        %v2222 = vpack.c.bf16 %v2214, %v2213
        %s2223 = scalar_lea.vmem [#allocation5], 576
        %v2224 = vld [vmem:[%s2223] sm:$0xff]
        %v2225 = vld [vmem:[%s2223 + $0x8] sm:$0xf]
        %v2226 = vld [vmem:[%s2223 + $0xc] sm:$0xff]
        %v2227 = vld [vmem:[%s2223 + $0x14] sm:$0xf]
        %v2228 = vld [vmem:[%s2223 + $0x18] sm:$0xff]
        %v2229 = vld [vmem:[%s2223 + $0x20] sm:$0xf]
        %v2230 = vld [vmem:[%s2223 + $0x24] sm:$0xff]
        %v2231 = vld [vmem:[%s2223 + $0x2c] sm:$0xf]
        %v2232 = vld [vmem:[%s2223 + $0x30] sm:$0xff]
        %v2233 = vld [vmem:[%s2223 + $0x38] sm:$0xf]
        %v2234 = vld [vmem:[%s2223 + $0x3c] sm:$0xff]
        %v2235 = vld [vmem:[%s2223 + $0x44] sm:$0xf]
        %v2236 = vld [vmem:[%s2223 + $0x48] sm:$0xff]
        %v2237 = vld [vmem:[%s2223 + $0x50] sm:$0xf]
        %v2238 = vld [vmem:[%s2223 + $0x54] sm:$0xff]
        %v2239 = vld [vmem:[%s2223 + $0x5c] sm:$0xf]
        %v2240 = vld [vmem:[%s2223 + $0x60] sm:$0xff]
        %v2241 = vld [vmem:[%s2223 + $0x68] sm:$0xf]
        %v2242 = vld [vmem:[%s2223 + $0x6c] sm:$0xff]
        %v2243 = vld [vmem:[%s2223 + $0x74] sm:$0xf]
        %v2244 = vld [vmem:[%s2223 + $0x78] sm:$0xff]
        %v2245 = vld [vmem:[%s2223 + $0x80] sm:$0xf]
        %v2246 = vld [vmem:[%s2223 + $0x84] sm:$0xff]
        %v2247 = vld [vmem:[%s2223 + $0x8c] sm:$0xf]
        %v2248 = vld [vmem:[%s2223 + $0x90] sm:$0xff]
        %v2249 = vld [vmem:[%s2223 + $0x98] sm:$0xf]
        %v2250 = vld [vmem:[%s2223 + $0x9c] sm:$0xff]
        %v2251 = vld [vmem:[%s2223 + $0xa4] sm:$0xf]
        %v2252 = vld [vmem:[%s2223 + $0xa8] sm:$0xff]
        %v2253 = vld [vmem:[%s2223 + $0xb0] sm:$0xf]
        %v2254 = vld [vmem:[%s2223 + $0xb4] sm:$0xff]
        %v2255 = vld [vmem:[%s2223 + $0xbc] sm:$0xf]
        %v2288 = vunpack.c.l.b16 %v2224
        %v2289 = vunpack.c.h.b16 %v2224
        %v2290 = vunpack.c.l.b16 %v2225
        %v2291 = vunpack.c.l.b16 %v2226
        %v2292 = vunpack.c.h.b16 %v2226
        %v2293 = vunpack.c.l.b16 %v2227
        %v2294 = vunpack.c.l.b16 %v2228
        %v2295 = vunpack.c.h.b16 %v2228
        %v2296 = vunpack.c.l.b16 %v2229
        %v2297 = vunpack.c.l.b16 %v2230
        %v2298 = vunpack.c.h.b16 %v2230
        %v2299 = vunpack.c.l.b16 %v2231
        %v2300 = vunpack.c.l.b16 %v2232
        %v2301 = vunpack.c.h.b16 %v2232
        %v2302 = vunpack.c.l.b16 %v2233
        %v2303 = vunpack.c.l.b16 %v2234
        %v2304 = vunpack.c.h.b16 %v2234
        %v2305 = vunpack.c.l.b16 %v2235
        %v2306 = vunpack.c.l.b16 %v2236
        %v2307 = vunpack.c.h.b16 %v2236
        %v2308 = vunpack.c.l.b16 %v2237
        %v2309 = vunpack.c.l.b16 %v2238
        %v2310 = vunpack.c.h.b16 %v2238
        %v2311 = vunpack.c.l.b16 %v2239
        %v2312 = vunpack.c.l.b16 %v2240
        %v2313 = vunpack.c.h.b16 %v2240
        %v2314 = vunpack.c.l.b16 %v2241
        %v2315 = vunpack.c.l.b16 %v2242
        %v2316 = vunpack.c.h.b16 %v2242
        %v2317 = vunpack.c.l.b16 %v2243
        %v2318 = vunpack.c.l.b16 %v2244
        %v2319 = vunpack.c.h.b16 %v2244
        %v2320 = vunpack.c.l.b16 %v2245
        %v2321 = vunpack.c.l.b16 %v2246
        %v2322 = vunpack.c.h.b16 %v2246
        %v2323 = vunpack.c.l.b16 %v2247
        %v2324 = vunpack.c.l.b16 %v2248
        %v2325 = vunpack.c.h.b16 %v2248
        %v2326 = vunpack.c.l.b16 %v2249
        %v2327 = vunpack.c.l.b16 %v2250
        %v2328 = vunpack.c.h.b16 %v2250
        %v2329 = vunpack.c.l.b16 %v2251
        %v2330 = vunpack.c.l.b16 %v2252
        %v2331 = vunpack.c.h.b16 %v2252
        %v2332 = vunpack.c.l.b16 %v2253
        %v2333 = vunpack.c.l.b16 %v2254
        %v2334 = vunpack.c.h.b16 %v2254
        %v2335 = vunpack.c.l.b16 %v2255
        %v2336 = vpack.c.b16 %v2291, %v2288
        %v2337 = vpack.c.b16 %v2292, %v2289
        %v2338 = vpack.c.b16 %v2293, %v2290
        %v2339 = vpack.c.b16 %v2297, %v2294
        %v2340 = vpack.c.b16 %v2298, %v2295
        %v2341 = vpack.c.b16 %v2299, %v2296
        %v2342 = vpack.c.b16 %v2303, %v2300
        %v2343 = vpack.c.b16 %v2304, %v2301
        %v2344 = vpack.c.b16 %v2305, %v2302
        %v2345 = vpack.c.b16 %v2309, %v2306
        %v2346 = vpack.c.b16 %v2310, %v2307
        %v2347 = vpack.c.b16 %v2311, %v2308
        %v2348 = vpack.c.b16 %v2315, %v2312
        %v2349 = vpack.c.b16 %v2316, %v2313
        %v2350 = vpack.c.b16 %v2317, %v2314
        %v2351 = vpack.c.b16 %v2321, %v2318
        %v2352 = vpack.c.b16 %v2322, %v2319
        %v2353 = vpack.c.b16 %v2323, %v2320
        %v2354 = vpack.c.b16 %v2327, %v2324
        %v2355 = vpack.c.b16 %v2328, %v2325
        %v2356 = vpack.c.b16 %v2329, %v2326
        %v2357 = vpack.c.b16 %v2333, %v2330
        %v2358 = vpack.c.b16 %v2334, %v2331
        %v2359 = vpack.c.b16 %v2335, %v2332
        %2384 = vmatprep.subr.bf16.mxu0 %v2358
        %2385 = vmatpush1.bf16.msra.mxu0 %v2357
        %2386 = vmatprep.subr.bf16.mxu0 %v2355
        %2387 = vmatpush1.bf16.msra.mxu0 %v2354
        %2388 = vmatprep.subr.bf16.mxu0 %v2352
        %2389 = vmatpush1.bf16.msra.mxu0 %v2351
        %2390 = vmatprep.subr.bf16.mxu0 %v2349
        %2391 = vmatpush1.bf16.msra.mxu0 %v2348
        %2392 = vmatprep.subr.bf16.mxu0 %v2346
        %2393 = vmatpush1.bf16.msra.mxu0 %v2345
        %2394 = vmatprep.subr.bf16.mxu0 %v2343
        %2395 = vmatpush1.bf16.msra.mxu0 %v2342
        %2396 = vmatprep.subr.bf16.mxu0 %v2340
        %2397 = vmatpush1.bf16.msra.mxu0 %v2339
        %2398 = vmatprep.subr.bf16.mxu0 %v2337
        %2399 = vmatpush1.bf16.msra.mxu0 %v2336
        %2400 = vmatprep.subr.bf16.mxu0 0
        %2401 = vmatpush2.bf16.msra.mxu0 0
        %2402 = vmatprep.subr.bf16.mxu0 0
        %2403 = vmatpush2.bf16.msra.mxu0 0
        %2404 = vmatprep.subr.bf16.mxu0 0
        %2405 = vmatpush2.bf16.msra.mxu0 0
        %2406 = vmatprep.subr.bf16.mxu0 0
        %2407 = vmatpush2.bf16.msra.mxu0 0
        %2408 = vmatprep.subr.bf16.mxu0 0
        %2409 = vmatpush2.bf16.msra.mxu0 0
        %2410 = vmatprep.subr.bf16.mxu0 0
        %2411 = vmatpush2.bf16.msra.mxu0 0
        %2412 = vmatprep.subr.bf16.mxu0 0
        %2413 = vmatpush2.bf16.msra.mxu0 0
        %2414 = vmatprep.subr.bf16.mxu0 0
        %2415 = vmatpush2.bf16.msra.mxu0 0
        %2416 = vmatprep.mubr.bf16.mxu0 0
        %2417 = vmatmul.mubr.bf16.gmra.mxu0 %v2215
        %v2418 = vpop.f32.mrf.mxu0
        %v2419 = vadd.f32 0.0, %v2418
        %v2420 = vpop.f32.mrf.mxu0
        %v2421 = vadd.f32 0.0, %v2420
        %v2422 = vpop.f32.mrf.mxu0
        %v2423 = vadd.f32 0.0, %v2422
        %v2424 = vpop.f32.mrf.mxu0
        %v2425 = vadd.f32 0.0, %v2424
        %2426 = vmatprep.mubr.bf16.mxu0 0
        %2427 = vmatmul.mubr.bf16.gmra.mxu0 %v2216
        %v2428 = vpop.f32.mrf.mxu0
        %v2429 = vadd.f32 0.0, %v2428
        %v2430 = vpop.f32.mrf.mxu0
        %v2431 = vadd.f32 0.0, %v2430
        %v2432 = vpop.f32.mrf.mxu0
        %v2433 = vadd.f32 0.0, %v2432
        %v2434 = vpop.f32.mrf.mxu0
        %v2435 = vadd.f32 0.0, %v2434
        %2436 = vmatprep.mubr.bf16.mxu0 0
        %2437 = vmatmul.mubr.bf16.gmra.mxu0 %v2217
        %v2438 = vpop.f32.mrf.mxu0
        %v2439 = vadd.f32 0.0, %v2438
        %v2440 = vpop.f32.mrf.mxu0
        %v2441 = vadd.f32 0.0, %v2440
        %v2442 = vpop.f32.mrf.mxu0
        %v2443 = vadd.f32 0.0, %v2442
        %v2444 = vpop.f32.mrf.mxu0
        %v2445 = vadd.f32 0.0, %v2444
        %2446 = vmatprep.mubr.bf16.mxu0 0
        %2447 = vmatmul.mubr.bf16.gmra.mxu0 %v2218
        %v2448 = vpop.f32.mrf.mxu0
        %v2449 = vadd.f32 0.0, %v2448
        %v2450 = vpop.f32.mrf.mxu0
        %v2451 = vadd.f32 0.0, %v2450
        %v2452 = vpop.f32.mrf.mxu0
        %v2453 = vadd.f32 0.0, %v2452
        %v2454 = vpop.f32.mrf.mxu0
        %v2455 = vadd.f32 0.0, %v2454
        %2456 = vmatprep.mubr.bf16.mxu0 0
        %2457 = vmatmul.mubr.bf16.gmra.mxu0 %v2219
        %v2458 = vpop.f32.mrf.mxu0
        %v2459 = vadd.f32 0.0, %v2458
        %v2460 = vpop.f32.mrf.mxu0
        %v2461 = vadd.f32 0.0, %v2460
        %v2462 = vpop.f32.mrf.mxu0
        %v2463 = vadd.f32 0.0, %v2462
        %v2464 = vpop.f32.mrf.mxu0
        %v2465 = vadd.f32 0.0, %v2464
        %2466 = vmatprep.mubr.bf16.mxu0 0
        %2467 = vmatmul.mubr.bf16.gmra.mxu0 %v2220
        %v2468 = vpop.f32.mrf.mxu0
        %v2469 = vadd.f32 0.0, %v2468
        %v2470 = vpop.f32.mrf.mxu0
        %v2471 = vadd.f32 0.0, %v2470
        %v2472 = vpop.f32.mrf.mxu0
        %v2473 = vadd.f32 0.0, %v2472
        %v2474 = vpop.f32.mrf.mxu0
        %v2475 = vadd.f32 0.0, %v2474
        %2476 = vmatprep.mubr.bf16.mxu0 0
        %2477 = vmatmul.mubr.bf16.gmra.mxu0 %v2221
        %v2478 = vpop.f32.mrf.mxu0
        %v2479 = vadd.f32 0.0, %v2478
        %v2480 = vpop.f32.mrf.mxu0
        %v2481 = vadd.f32 0.0, %v2480
        %v2482 = vpop.f32.mrf.mxu0
        %v2483 = vadd.f32 0.0, %v2482
        %v2484 = vpop.f32.mrf.mxu0
        %v2485 = vadd.f32 0.0, %v2484
        %2486 = vmatprep.mubr.bf16.mxu0 0
        %2487 = vmatmul.mubr.bf16.gmra.mxu0 %v2222
        %v2488 = vpop.f32.mrf.mxu0
        %v2489 = vadd.f32 0.0, %v2488
        %v2490 = vpop.f32.mrf.mxu0
        %v2491 = vadd.f32 0.0, %v2490
        %v2492 = vpop.f32.mrf.mxu0
        %v2493 = vadd.f32 0.0, %v2492
        %v2494 = vpop.f32.mrf.mxu0
        %v2495 = vadd.f32 0.0, %v2494
        %2496 = vdwg.mxu0
        %2497 = vmatprep.subr.bf16.mxu0 0
        %2498 = vmatpush1.bf16.msra.mxu0 %v2359
        %2499 = vmatprep.subr.bf16.mxu0 0
        %2500 = vmatpush1.bf16.msra.mxu0 %v2356
        %2501 = vmatprep.subr.bf16.mxu0 0
        %2502 = vmatpush1.bf16.msra.mxu0 %v2353
        %2503 = vmatprep.subr.bf16.mxu0 0
        %2504 = vmatpush1.bf16.msra.mxu0 %v2350
        %2505 = vmatprep.subr.bf16.mxu0 0
        %2506 = vmatpush1.bf16.msra.mxu0 %v2347
        %2507 = vmatprep.subr.bf16.mxu0 0
        %2508 = vmatpush1.bf16.msra.mxu0 %v2344
        %2509 = vmatprep.subr.bf16.mxu0 0
        %2510 = vmatpush1.bf16.msra.mxu0 %v2341
        %2511 = vmatprep.subr.bf16.mxu0 0
        %2512 = vmatpush1.bf16.msra.mxu0 %v2338
        %2513 = vmatprep.subr.bf16.mxu0 0
        %2514 = vmatpush2.bf16.msra.mxu0 0
        %2515 = vmatprep.subr.bf16.mxu0 0
        %2516 = vmatpush2.bf16.msra.mxu0 0
        %2517 = vmatprep.subr.bf16.mxu0 0
        %2518 = vmatpush2.bf16.msra.mxu0 0
        %2519 = vmatprep.subr.bf16.mxu0 0
        %2520 = vmatpush2.bf16.msra.mxu0 0
        %2521 = vmatprep.subr.bf16.mxu0 0
        %2522 = vmatpush2.bf16.msra.mxu0 0
        %2523 = vmatprep.subr.bf16.mxu0 0
        %2524 = vmatpush2.bf16.msra.mxu0 0
        %2525 = vmatprep.subr.bf16.mxu0 0
        %2526 = vmatpush2.bf16.msra.mxu0 0
        %2527 = vmatprep.subr.bf16.mxu0 0
        %2528 = vmatpush2.bf16.msra.mxu0 0
        %2529 = vmatprep.mubr.bf16.mxu0 0
        %2530 = vmatmul.mubr.bf16.gmra.mxu0 %v2215
        %v2531 = vpop.f32.mrf.mxu0
        %v2532 = vadd.f32 0.0, %v2531
        %v2533 = vpop.f32.mrf.mxu0
        %v2534 = vpop.f32.mrf.mxu0
        %v2535 = vadd.f32 0.0, %v2534
        %v2536 = vpop.f32.mrf.mxu0
        %2537 = vmatprep.mubr.bf16.mxu0 0
        %2538 = vmatmul.mubr.bf16.gmra.mxu0 %v2216
        %v2539 = vpop.f32.mrf.mxu0
        %v2540 = vadd.f32 0.0, %v2539
        %v2541 = vpop.f32.mrf.mxu0
        %v2542 = vpop.f32.mrf.mxu0
        %v2543 = vadd.f32 0.0, %v2542
        %v2544 = vpop.f32.mrf.mxu0
        %2545 = vmatprep.mubr.bf16.mxu0 0
        %2546 = vmatmul.mubr.bf16.gmra.mxu0 %v2217
        %v2547 = vpop.f32.mrf.mxu0
        %v2548 = vadd.f32 0.0, %v2547
        %v2549 = vpop.f32.mrf.mxu0
        %v2550 = vpop.f32.mrf.mxu0
        %v2551 = vadd.f32 0.0, %v2550
        %v2552 = vpop.f32.mrf.mxu0
        %2553 = vmatprep.mubr.bf16.mxu0 0
        %2554 = vmatmul.mubr.bf16.gmra.mxu0 %v2218
        %v2555 = vpop.f32.mrf.mxu0
        %v2556 = vadd.f32 0.0, %v2555
        %v2557 = vpop.f32.mrf.mxu0
        %v2558 = vpop.f32.mrf.mxu0
        %v2559 = vadd.f32 0.0, %v2558
        %v2560 = vpop.f32.mrf.mxu0
        %2561 = vmatprep.mubr.bf16.mxu0 0
        %2562 = vmatmul.mubr.bf16.gmra.mxu0 %v2219
        %v2563 = vpop.f32.mrf.mxu0
        %v2564 = vadd.f32 0.0, %v2563
        %v2565 = vpop.f32.mrf.mxu0
        %v2566 = vpop.f32.mrf.mxu0
        %v2567 = vadd.f32 0.0, %v2566
        %v2568 = vpop.f32.mrf.mxu0
        %2569 = vmatprep.mubr.bf16.mxu0 0
        %2570 = vmatmul.mubr.bf16.gmra.mxu0 %v2220
        %v2571 = vpop.f32.mrf.mxu0
        %v2572 = vadd.f32 0.0, %v2571
        %v2573 = vpop.f32.mrf.mxu0
        %v2574 = vpop.f32.mrf.mxu0
        %v2575 = vadd.f32 0.0, %v2574
        %v2576 = vpop.f32.mrf.mxu0
        %2577 = vmatprep.mubr.bf16.mxu0 0
        %2578 = vmatmul.mubr.bf16.gmra.mxu0 %v2221
        %v2579 = vpop.f32.mrf.mxu0
        %v2580 = vadd.f32 0.0, %v2579
        %v2581 = vpop.f32.mrf.mxu0
        %v2582 = vpop.f32.mrf.mxu0
        %v2583 = vadd.f32 0.0, %v2582
        %v2584 = vpop.f32.mrf.mxu0
        %2585 = vmatprep.mubr.bf16.mxu0 0
        %2586 = vmatmul.mubr.bf16.gmra.mxu0 %v2222
        %v2587 = vpop.f32.mrf.mxu0
        %v2588 = vadd.f32 0.0, %v2587
        %v2589 = vpop.f32.mrf.mxu0
        %v2590 = vpop.f32.mrf.mxu0
        %v2591 = vadd.f32 0.0, %v2590
        %v2592 = vpop.f32.mrf.mxu0
        %2593 = vdwg.mxu0
        %v2594 = vrot.slane %v2419, 6
        %v2595 = vrot.slane %v2429, 6
        %v2596 = vrot.slane %v2439, 6
        %v2597 = vrot.slane %v2449, 6
        %v2598 = vrot.slane %v2459, 6
        %v2599 = vrot.slane %v2469, 6
        %v2600 = vrot.slane %v2479, 6
        %v2601 = vrot.slane %v2489, 6
        %v2602 = vrot.slane %v2423, 6
        %v2603 = vrot.slane %v2433, 6
        %v2604 = vrot.slane %v2443, 6
        %v2605 = vrot.slane %v2453, 6
        %v2606 = vrot.slane %v2463, 6
        %v2607 = vrot.slane %v2473, 6
        %v2608 = vrot.slane %v2483, 6
        %v2609 = vrot.slane %v2493, 6
        %vm2610 = vcmp.lt.s32.totalorder %v264, 2
        %v2611 = vsel %vm2610, %v2594, %v2602
        %v2612 = vsel %vm2610, %v2595, %v2603
        %v2613 = vsel %vm2610, %v2596, %v2604
        %v2614 = vsel %vm2610, %v2597, %v2605
        %v2615 = vsel %vm2610, %v2598, %v2606
        %v2616 = vsel %vm2610, %v2599, %v2607
        %v2617 = vsel %vm2610, %v2600, %v2608
        %v2618 = vsel %vm2610, %v2601, %v2609
        %v2619 = vsel %vm2610, %v2602, %v2594
        %v2620 = vsel %vm2610, %v2603, %v2595
        %v2621 = vsel %vm2610, %v2604, %v2596
        %v2622 = vsel %vm2610, %v2605, %v2597
        %v2623 = vsel %vm2610, %v2606, %v2598
        %v2624 = vsel %vm2610, %v2607, %v2599
        %v2625 = vsel %vm2610, %v2608, %v2600
        %v2626 = vsel %vm2610, %v2609, %v2601
        %v2627 = vsel %vm272, 1, 0
        %v2628 = vsel %vm273, 1, 0
        %vm2629 = vcmp.eq.s32.totalorder %v2627, 1
        %vm2630 = vcmp.eq.s32.totalorder %v2628, 1
        %v2631 = vsel %vm2629, %v2619, 0.0
        %v2632 = vsel %vm2630, %v2611, 0.0
        %v2633 = vsel %vm2629, %v2620, 0.0
        %v2634 = vsel %vm2630, %v2612, 0.0
        %v2635 = vsel %vm2629, %v2621, 0.0
        %v2636 = vsel %vm2630, %v2613, 0.0
        %v2637 = vsel %vm2629, %v2622, 0.0
        %v2638 = vsel %vm2630, %v2614, 0.0
        %v2639 = vsel %vm2629, %v2623, 0.0
        %v2640 = vsel %vm2630, %v2615, 0.0
        %v2641 = vsel %vm2629, %v2624, 0.0
        %v2642 = vsel %vm2630, %v2616, 0.0
        %v2643 = vsel %vm2629, %v2625, 0.0
        %v2644 = vsel %vm2630, %v2617, 0.0
        %v2645 = vsel %vm2629, %v2626, 0.0
        %v2646 = vsel %vm2630, %v2618, 0.0
        %v2647 = vadd.f32 %v2421, %v2631
        %v2648 = vadd.f32 %v2425, %v2632
        %v2649 = vadd.f32 %v2431, %v2633
        %v2650 = vadd.f32 %v2435, %v2634
        %v2651 = vadd.f32 %v2441, %v2635
        %v2652 = vadd.f32 %v2445, %v2636
        %v2653 = vadd.f32 %v2451, %v2637
        %v2654 = vadd.f32 %v2455, %v2638
        %v2655 = vadd.f32 %v2461, %v2639
        %v2656 = vadd.f32 %v2465, %v2640
        %v2657 = vadd.f32 %v2471, %v2641
        %v2658 = vadd.f32 %v2475, %v2642
        %v2659 = vadd.f32 %v2481, %v2643
        %v2660 = vadd.f32 %v2485, %v2644
        %v2661 = vadd.f32 %v2491, %v2645
        %v2662 = vadd.f32 %v2495, %v2646
        %v2663 = vrot.slane %v2532, 2
        %v2664 = vrot.slane %v2540, 2
        %v2665 = vrot.slane %v2548, 2
        %v2666 = vrot.slane %v2556, 2
        %v2667 = vrot.slane %v2564, 2
        %v2668 = vrot.slane %v2572, 2
        %v2669 = vrot.slane %v2580, 2
        %v2670 = vrot.slane %v2588, 2
        %v2671 = vrot.slane %v2535, 2
        %v2672 = vrot.slane %v2543, 2
        %v2673 = vrot.slane %v2551, 2
        %v2674 = vrot.slane %v2559, 2
        %v2675 = vrot.slane %v2567, 2
        %v2676 = vrot.slane %v2575, 2
        %v2677 = vrot.slane %v2583, 2
        %v2678 = vrot.slane %v2591, 2
        %vm2679 = vcmp.lt.s32.totalorder %v264, 6
        %v2680 = vsel %vm2679, %v2663, %v2671
        %v2681 = vsel %vm2679, %v2664, %v2672
        %v2682 = vsel %vm2679, %v2665, %v2673
        %v2683 = vsel %vm2679, %v2666, %v2674
        %v2684 = vsel %vm2679, %v2667, %v2675
        %v2685 = vsel %vm2679, %v2668, %v2676
        %v2686 = vsel %vm2679, %v2669, %v2677
        %v2687 = vsel %vm2679, %v2670, %v2678
        %v2688 = vsel %vm2679, %v2671, %v2663
        %v2689 = vsel %vm2679, %v2672, %v2664
        %v2690 = vsel %vm2679, %v2673, %v2665
        %v2691 = vsel %vm2679, %v2674, %v2666
        %v2692 = vsel %vm2679, %v2675, %v2667
        %v2693 = vsel %vm2679, %v2676, %v2668
        %v2694 = vsel %vm2679, %v2677, %v2669
        %v2695 = vsel %vm2679, %v2678, %v2670
        %v2696 = vsel %vm296, 1, 0
        %v2697 = vsel %vm297, 1, 0
        %vm2698 = vcmp.eq.s32.totalorder %v2696, 1
        %vm2699 = vcmp.eq.s32.totalorder %v2697, 1
        %v2700 = vsel %vm2698, %v2680, 0.0
        %v2701 = vsel %vm2699, %v2688, 0.0
        %v2702 = vsel %vm2698, %v2681, 0.0
        %v2703 = vsel %vm2699, %v2689, 0.0
        %v2704 = vsel %vm2698, %v2682, 0.0
        %v2705 = vsel %vm2699, %v2690, 0.0
        %v2706 = vsel %vm2698, %v2683, 0.0
        %v2707 = vsel %vm2699, %v2691, 0.0
        %v2708 = vsel %vm2698, %v2684, 0.0
        %v2709 = vsel %vm2699, %v2692, 0.0
        %v2710 = vsel %vm2698, %v2685, 0.0
        %v2711 = vsel %vm2699, %v2693, 0.0
        %v2712 = vsel %vm2698, %v2686, 0.0
        %v2713 = vsel %vm2699, %v2694, 0.0
        %v2714 = vsel %vm2698, %v2687, 0.0
        %v2715 = vsel %vm2699, %v2695, 0.0
        %v2716 = vadd.f32 %v2647, %v2700
        %v2717 = vadd.f32 %v2648, %v2701
        %v2718 = vadd.f32 %v2649, %v2702
        %v2719 = vadd.f32 %v2650, %v2703
        %v2720 = vadd.f32 %v2651, %v2704
        %v2721 = vadd.f32 %v2652, %v2705
        %v2722 = vadd.f32 %v2653, %v2706
        %v2723 = vadd.f32 %v2654, %v2707
        %v2724 = vadd.f32 %v2655, %v2708
        %v2725 = vadd.f32 %v2656, %v2709
        %v2726 = vadd.f32 %v2657, %v2710
        %v2727 = vadd.f32 %v2658, %v2711
        %v2728 = vadd.f32 %v2659, %v2712
        %v2729 = vadd.f32 %v2660, %v2713
        %v2730 = vadd.f32 %v2661, %v2714
        %v2731 = vadd.f32 %v2662, %v2715
        %v2732 = vld [vmem:[#allocation7 + $0x4] sm:$0x1]
        %v2733 = vlaneseq
        %v2734 = vshrl.u32 %v2733, 7
        %v2735 = vsub.s32 0, %v2734
        %v2736 = vrot.slane %v2732, %v2735
        %v2737 = vmul.f32 %v2716, %v2736
        %v2738 = vmul.f32 %v2717, %v2736
        %v2739 = vmul.f32 %v2718, %v2736
        %v2740 = vmul.f32 %v2719, %v2736
        %v2741 = vmul.f32 %v2720, %v2736
        %v2742 = vmul.f32 %v2721, %v2736
        %v2743 = vmul.f32 %v2722, %v2736
        %v2744 = vmul.f32 %v2723, %v2736
        %v2745 = vmul.f32 %v2724, %v2736
        %v2746 = vmul.f32 %v2725, %v2736
        %v2747 = vmul.f32 %v2726, %v2736
        %v2748 = vmul.f32 %v2727, %v2736
        %v2749 = vmul.f32 %v2728, %v2736
        %v2750 = vmul.f32 %v2729, %v2736
        %v2751 = vmul.f32 %v2730, %v2736
        %v2752 = vmul.f32 %v2731, %v2736
        %v2753 = vld [vmem:[#allocation7 + $0x5] sm:$0x1]
        %v2754 = vlaneseq
        %v2755 = vshrl.u32 %v2754, 7
        %v2756 = vsub.s32 0, %v2755
        %v2757 = vrot.slane %v2753, %v2756
        %v2758 = vadd.f32 %v2737, %v2757
        %v2759 = vadd.f32 %v2738, %v2757
        %v2760 = vadd.f32 %v2739, %v2757
        %v2761 = vadd.f32 %v2740, %v2757
        %v2762 = vadd.f32 %v2741, %v2757
        %v2763 = vadd.f32 %v2742, %v2757
        %v2764 = vadd.f32 %v2743, %v2757
        %v2765 = vadd.f32 %v2744, %v2757
        %v2766 = vadd.f32 %v2745, %v2757
        %v2767 = vadd.f32 %v2746, %v2757
        %v2768 = vadd.f32 %v2747, %v2757
        %v2769 = vadd.f32 %v2748, %v2757
        %v2770 = vadd.f32 %v2749, %v2757
        %v2771 = vadd.f32 %v2750, %v2757
        %v2772 = vadd.f32 %v2751, %v2757
        %v2773 = vadd.f32 %v2752, %v2757
        %v2774 = vadd.f32 %v2758, %v241
        %v2775 = vadd.f32 %v2759, %v242
        %v2776 = vadd.f32 %v2760, %v243
        %v2777 = vadd.f32 %v2761, %v244
        %v2778 = vadd.f32 %v2762, %v245
        %v2779 = vadd.f32 %v2763, %v246
        %v2780 = vadd.f32 %v2764, %v247
        %v2781 = vadd.f32 %v2765, %v248
        %v2782 = vadd.f32 %v2766, %v249
        %v2783 = vadd.f32 %v2767, %v250
        %v2784 = vadd.f32 %v2768, %v251
        %v2785 = vadd.f32 %v2769, %v252
        %v2786 = vadd.f32 %v2770, %v253
        %v2787 = vadd.f32 %v2771, %v254
        %v2788 = vadd.f32 %v2772, %v255
        %v2789 = vadd.f32 %v2773, %v256
        %v2790 = vmax.f32 %v2774, 0.0
        %v2791 = vmax.f32 %v2775, 0.0
        %v2792 = vmax.f32 %v2776, 0.0
        %v2793 = vmax.f32 %v2777, 0.0
        %v2794 = vmax.f32 %v2778, 0.0
        %v2795 = vmax.f32 %v2779, 0.0
        %v2796 = vmax.f32 %v2780, 0.0
        %v2797 = vmax.f32 %v2781, 0.0
        %v2798 = vmax.f32 %v2782, 0.0
        %v2799 = vmax.f32 %v2783, 0.0
        %v2800 = vmax.f32 %v2784, 0.0
        %v2801 = vmax.f32 %v2785, 0.0
        %v2802 = vmax.f32 %v2786, 0.0
        %v2803 = vmax.f32 %v2787, 0.0
        %v2804 = vmax.f32 %v2788, 0.0
        %v2805 = vmax.f32 %v2789, 0.0
        %2806 = vst [vmem:[%s229] sm:$0xff] %v2790
        %2807 = vst [vmem:[%s229 + $0x8] sm:$0xff] %v2791
        %2808 = vst [vmem:[%s229 + $0x10] sm:$0xff] %v2792
        %2809 = vst [vmem:[%s229 + $0x18] sm:$0xff] %v2793
        %2810 = vst [vmem:[%s229 + $0x20] sm:$0xff] %v2794
        %2811 = vst [vmem:[%s229 + $0x28] sm:$0xff] %v2795
        %2812 = vst [vmem:[%s229 + $0x30] sm:$0xff] %v2796
        %2813 = vst [vmem:[%s229 + $0x38] sm:$0xff] %v2797
        %2814 = vst [vmem:[%s229 + $0x40] sm:$0xff] %v2798
        %2815 = vst [vmem:[%s229 + $0x48] sm:$0xff] %v2799
        %2816 = vst [vmem:[%s229 + $0x50] sm:$0xff] %v2800
        %2817 = vst [vmem:[%s229 + $0x58] sm:$0xff] %v2801
        %2818 = vst [vmem:[%s229 + $0x60] sm:$0xff] %v2802
        %2819 = vst [vmem:[%s229 + $0x68] sm:$0xff] %v2803
        %2820 = vst [vmem:[%s229 + $0x70] sm:$0xff] %v2804
        %2821 = vst [vmem:[%s229 + $0x78] sm:$0xff] %v2805
        %s2822 = sand.u32 %s111, 1
        %s2823 = scalar_lea.sflag [#allocation4], %s2822
        %s2824 = sand.u32 %s111, 1
        %s2825 = smul.addr %s2824, 128
        %s2826 = scalar_lea.vmem [#allocation8], %s2825
        // Predicated region
        $region45: #{tpu_custom_call.1} parent=31 // pred_check
          %p2827 = pneg %p121
        $region46: #{tpu_custom_call.1} parent=31 // pred_check_branch
          %2829 = sbr.rel (%p2827) target = $region48
        $region47: #{tpu_custom_call.1} parent=31 // pred_region
          %s2830 = smul.u32 8, %s26
          %s2832 = ssub.s32 2048, 2048
          %2833 = vsyncadd %s2823, %s2832
          %s2834 = smul.addr %s2830, 2
          %s2835 = smul.addr %s25, 48
          %s2836 = sadd.s32 %s2834, %s2835
          %s2837 = smul.addr %s2836, 128
          %s2838 = scalar_lea.hbm %s3, %s2837
          %s2839 = sshll.u32 %s2826, 4
          %s2840 = int_to_ptr.vmem [resolvable:$true] %s2839
          %2845 = dma.vmem_to_hbm [thread:$0]  %s2840, 2048, %s2838, %s2823, 128, 128, 8
        $region48: #{tpu_custom_call.1} parent=31 // pred_fallthru
          _
      $region32: #{tpu_custom_call.1} parent=5 // pred_fallthru
        _
      %p2846 = scmp.le.s32.totalorder 2, %s16
      // Predicated region
      $region49: #{tpu_custom_call.1} parent=5 // pred_check
        %p2847 = pneg %p2846
      $region50: #{tpu_custom_call.1} parent=5 // pred_check_branch
        %2849 = sbr.rel (%p2847) target = $region52
      $region51: #{tpu_custom_call.1} parent=5 // pred_region
        %s2850 = ssub.s32 %s16, 2
        // Predicated region
        $region53: #{tpu_custom_call.1} parent=51 // pred_check
          %p2851 = pneg %p127
        $region54: #{tpu_custom_call.1} parent=51 // pred_check_branch
          %2853 = sbr.rel (%p2851) target = $region56
        $region55: #{tpu_custom_call.1} parent=51 // pred_region
          %s2854 = sand.u32 %s112, 1
          %s2855 = scalar_lea.sflag [#allocation4], %s2854
          %s2856 = sand.u32 %s112, 1
          %s2857 = smul.addr %s2856, 128
          %s2858 = scalar_lea.vmem [#allocation8], %s2857
          %2859 = dma.done %s2855, 2048
        $region56: #{tpu_custom_call.1} parent=51 // pred_fallthru
          _
      $region52: #{tpu_custom_call.1} parent=5 // pred_fallthru
        _
    $region6: #{tpu_custom_call.1} parent=1 // loop_footer
      %s20 = sadd.s32 1, %s16
    $region7: #{tpu_custom_call.1} parent=1 // loop_footer_branch
      %15 = sbr.rel target = $region3
    $region8: #{tpu_custom_call.1} parent=1 // loop_exit
      _
    %2860 = vsyncpa [#allocation3], 1
    %s2861 = scalar_lea.sflag [#allocation3], 1
    %2862 = vsyncpa %s2861, 1
    %2863 = vsyncpa [#allocation6], 1
    %2864 = vsyncpa [#allocation4], 1
    %s2865 = scalar_lea.sflag [#allocation4], 1
    %2866 = vsyncpa %s2865, 1

</llo_original>
